<compile_context>
chip_gen: v5e
topology: v5e:2x2
jax: 0.10.0
libtpu: 0.0.40
codegen_flags: <defaults>
</compile_context>

<pallas_src>
import functools

import numpy as np
import jax
import jax.numpy as jnp
from jax.experimental import pallas as pl
from jax.experimental.pallas import tpu as pltpu


# ---------------------------------------------------------------------------
# Parameter construction (deterministic, mirrors the module's __init__ helpers)
# ---------------------------------------------------------------------------
def dct_coeff(n, k, n_):
    return np.cos(np.pi / n_ * (n + 0.5) * k)


def idct_coeff(n, k, n_):
    return (int(0 == n) * (-1 / 2) + np.cos(np.pi / n_ * (k + 0.5) * n)) * np.sqrt(
        1 / (2.0 * n_)
    )


def gen_matrix(size, fn):
    # M[k, n] = fn(n, k, size); matches gen_filters' separable structure.
    m = np.zeros((size, size), dtype=np.float64)
    for k in range(size):
        for n in range(size):
            m[k, n] = fn(n, k, size)
    return m


def get_jpeg_yuv_filter_mask(shape, window_size, keep_count):
    mask = np.zeros((window_size, window_size), dtype=np.uint8)
    index_order = sorted(
        ((x, y) for x in range(window_size) for y in range(window_size)),
        key=lambda p: (p[0] + p[1], -p[1] if (p[0] + p[1]) % 2 else p[1]),
    )
    for i, j in index_order[0:keep_count]:
        mask[i, j] = 1
    return np.tile(
        mask,
        (
            int(np.ceil(shape[0] / window_size)),
            int(np.ceil(shape[1] / window_size)),
        ),
    )[0 : shape[0], 0 : shape[1]]


def _round_up(n, m):
    return ((n + m - 1) // m) * m


# ---------------------------------------------------------------------------
# Pallas kernel (one (1, 3, TH, TW) spatial tile per grid step)
# ---------------------------------------------------------------------------
def _jpeg_kernel(x_ref, mask_ref, dh_ref, dwT_ref, ih_ref, iwT_ref, o_ref):
    # x_ref / o_ref : (1, 3, TH, TW) f32 image tile
    # mask_ref      : (3*TH, TW) f32  -- Y/U/V keep-masks stacked along rows
    # dh_ref/ih_ref : (3*TH, 3*TH) bf16 block-diag kron(I_{3*TH/8}, D / Dinv)
    # dwT_ref/iwT_ref: (TW, TW) bf16  block-diag kron(I_{TW/8}, D / Dinv)^T
    r = x_ref[0, 0, :, :]
    g = x_ref[0, 1, :, :]
    b = x_ref[0, 2, :, :]

    # rgb2yuv in f32 (exact coefficients from the module)
    y = 0.299 * r + 0.587 * g + 0.114 * b
    u = -0.14713 * r + -0.28886 * g + 0.436 * b
    v = 0.615 * r + -0.51499 * g + -0.10001 * b

    # Stack the 3 channels along the sublane (row) axis -> one fused matmul
    # chain for the whole tile (4 MXU dots instead of 12).
    x3 = jnp.concatenate([y, u, v], axis=0).astype(jnp.bfloat16)  # (3*TH, TW)

    # blockwise 2-D DCT:  kron(I, D) @ X @ kron(I, D)^T  (bf16 in, f32 acc)
    d = jnp.dot(dh_ref[...], x3, preferred_element_type=jnp.float32)
    d = jnp.dot(d.astype(jnp.bfloat16), dwT_ref[...],
                preferred_element_type=jnp.float32)

    # jpeg keep-coefficient mask (f32)
    dm = d * mask_ref[...]

    # blockwise 2-D IDCT
    rec = jnp.dot(ih_ref[...], dm.astype(jnp.bfloat16),
                  preferred_element_type=jnp.float32)
    rec = jnp.dot(rec.astype(jnp.bfloat16), iwT_ref[...],
                  preferred_element_type=jnp.float32)

    th = x_ref.shape[2]
    yy = rec[0 * th:1 * th, :]
    uu = rec[1 * th:2 * th, :]
    vv = rec[2 * th:3 * th, :]

    # yuv2rgb in f32 (exact coefficients from the module)
    o_ref[0, 0, :, :] = yy + 1.13983 * vv
    o_ref[0, 1, :, :] = yy + (-0.39465) * uu + (-0.5806) * vv
    o_ref[0, 2, :, :] = yy + 2.03211 * uu


# ---------------------------------------------------------------------------
# Wrapper (padding, constant setup, pallas_call, crop)
# ---------------------------------------------------------------------------
@functools.partial(jax.jit, static_argnames=("yuv_keep_weights",))
def jpeg_compression(x, yuv_keep_weights=(25, 9, 9)):
    x = jnp.asarray(x, jnp.float32)
    B, C, H, W = x.shape
    assert C == 3, "JpegCompression expects 3-channel (RGB) input"

    # Lane-dense, MXU-native tiles.  Padding zeros stay zero through the
    # block-local linear transform and are cropped afterwards, so this is
    # equivalent to the module's pad-to-multiple-of-8 + crop.
    TH = 128
    Hp = _round_up(H, TH)
    Wp = _round_up(W, 128)
    TW = 256 if Wp % 256 == 0 else 128
    xp = jnp.pad(x, ((0, 0), (0, 0), (0, Hp - H), (0, Wp - W)))
    # TODO(synk): fuse the pad/crop into the kernel (masked edge loads/stores
    # or input_output_aliases) to remove these extra HBM passes for
    # non-tile-aligned H/W.

    # Constant per-tile operands — identical for every grid step.
    D = gen_matrix(8, dct_coeff)
    I8 = gen_matrix(8, idct_coeff)
    dh3 = np.kron(np.eye(3 * TH // 8), D)        # (3*TH, 3*TH)
    ih3 = np.kron(np.eye(3 * TH // 8), I8)       # (3*TH, 3*TH)
    dwT = np.kron(np.eye(TW // 8), D).T          # (TW, TW)
    iwT = np.kron(np.eye(TW // 8), I8).T         # (TW, TW)
    mask3 = np.concatenate(
        [get_jpeg_yuv_filter_mask((TH, TW), 8, k) for k in yuv_keep_weights],
        axis=0,
    ).astype(np.float32)                         # (3*TH, TW)

    dh3 = jnp.asarray(dh3, jnp.bfloat16)
    ih3 = jnp.asarray(ih3, jnp.bfloat16)
    dwT = jnp.asarray(dwT, jnp.bfloat16)
    iwT = jnp.asarray(iwT, jnp.bfloat16)
    mask3 = jnp.asarray(mask3, jnp.float32)

    out = pl.pallas_call(
        _jpeg_kernel,
        out_shape=jax.ShapeDtypeStruct((B, 3, Hp, Wp), jnp.float32),
        grid_spec=pltpu.PrefetchScalarGridSpec(
            num_scalar_prefetch=0,
            grid=(B, Hp // TH, Wp // TW),
            in_specs=[
                pl.BlockSpec((1, 3, TH, TW), lambda b, i, j: (b, 0, i, j)),
                pl.BlockSpec((3 * TH, TW), lambda b, i, j: (0, 0)),
                pl.BlockSpec((3 * TH, 3 * TH), lambda b, i, j: (0, 0)),
                pl.BlockSpec((TW, TW), lambda b, i, j: (0, 0)),
                pl.BlockSpec((3 * TH, 3 * TH), lambda b, i, j: (0, 0)),
                pl.BlockSpec((TW, TW), lambda b, i, j: (0, 0)),
            ],
            out_specs=pl.BlockSpec((1, 3, TH, TW), lambda b, i, j: (b, 0, i, j)),
        ),
        compiler_params=pltpu.CompilerParams(
            dimension_semantics=("parallel", "parallel", "parallel"),
        ),
    )(xp, mask3, dh3, dwT, ih3, iwT)

    # crop the zero padding (matches the module's final slice)
    return out[:, :, :H, :W]


# ---------------------------------------------------------------------------
# Pure numpy f32 reference (independent blockwise formulation) for validation
# ---------------------------------------------------------------------------
def _reference(x, yuv_keep_weights=(25, 9, 9)):
    xn = np.asarray(x, dtype=np.float32)
    B, C, H, W = xn.shape
    ph, pw = (8 - H % 8) % 8, (8 - W % 8) % 8
    xp = np.pad(xn, ((0, 0), (0, 0), (0, ph), (0, pw)))
    Hp, Wp = H + ph, W + pw

    M_r2y = np.array(
        [[0.299, 0.587, 0.114],
         [-0.14713, -0.28886, 0.436],
         [0.615, -0.51499, -0.10001]], np.float32)
    M_y2r = np.array(
        [[1.0, 0.0, 1.13983],
         [1.0, -0.39465, -0.5806],
         [1.0, 2.03211, 0.0]], np.float32)

    yuv = np.einsum("ij,bjhw->bihw", M_r2y, xp)
    D = gen_matrix(8, dct_coeff).astype(np.float32)
    I8 = gen_matrix(8, idct_coeff).astype(np.float32)
    blk = yuv.reshape(B, 3, Hp // 8, 8, Wp // 8, 8)
    d = np.einsum("pq,bcaqer,sr->bcapes", D, blk, D)
    m = np.stack(
        [get_jpeg_yuv_filter_mask((8, 8), 8, k) for k in yuv_keep_weights]
    ).astype(np.float32)
    d = d * m[None, :, None, :, None, :]
    rec = np.einsum("pq,bcaqer,sr->bcapes", I8, d, I8)
    rec = rec.reshape(B, 3, Hp, Wp)
    rgb = np.einsum("ij,bjhw->bihw", M_y2r, rec)
    return rgb[:, :, :H, :W]


if __name__ == "__main__":
    key = jax.random.PRNGKey(0)
    x = jax.random.normal(key, (2, 3, 16, 16), dtype=jnp.float32)

    out = jpeg_compression(x)
    out = jax.block_until_ready(out)

    ref = _reference(np.asarray(x))
    # bf16 MXU operands (f32 accumulation) -> looser tolerance than pure f32;
    # measured/expected error rms ~1e-2, worst element well under 1e-1.
    np.testing.assert_allclose(np.asarray(out), ref, rtol=5e-2, atol=1e-1)

    print("KERNEL_OK")
</pallas_src>

<mosaic_0001>
module attributes {stable_mosaic.version = 11 : i64} {
  func.func @_jpeg_kernel(%arg0: i32, %arg1: i32, %arg2: i32, %arg3: memref<1x3x128x128xf32, #tpu.memory_space<vmem>>, %arg4: memref<384x128xf32, #tpu.memory_space<vmem>>, %arg5: memref<384x384xbf16, #tpu.memory_space<vmem>>, %arg6: memref<128x128xbf16, #tpu.memory_space<vmem>>, %arg7: memref<384x384xbf16, #tpu.memory_space<vmem>>, %arg8: memref<128x128xbf16, #tpu.memory_space<vmem>>, %arg9: memref<1x3x128x128xf32, #tpu.memory_space<vmem>>) attributes {dimension_semantics = [#tpu.dimension_semantics<parallel>, #tpu.dimension_semantics<parallel>, #tpu.dimension_semantics<parallel>], iteration_bounds = array<i64: 2, 1, 1>, scalar_prefetch = 0 : i64, scratch_operands = 0 : i64, tpu.core_type = #tpu.core_type<tc>, window_params = [{transform_indices = @transform_0, window_bounds = array<i64: 1, 3, 128, 128>}, {pipeline_mode = #tpu.pipeline_mode<synchronous>, transform_indices = @transform_1, window_bounds = array<i64: 384, 128>}, {pipeline_mode = #tpu.pipeline_mode<synchronous>, transform_indices = @transform_2, window_bounds = array<i64: 384, 384>}, {pipeline_mode = #tpu.pipeline_mode<synchronous>, transform_indices = @transform_3, window_bounds = array<i64: 128, 128>}, {pipeline_mode = #tpu.pipeline_mode<synchronous>, transform_indices = @transform_4, window_bounds = array<i64: 384, 384>}, {pipeline_mode = #tpu.pipeline_mode<synchronous>, transform_indices = @transform_5, window_bounds = array<i64: 128, 128>}, {transform_indices = @transform_6, window_bounds = array<i64: 1, 3, 128, 128>}]} {
    %c0 = arith.constant 0 : index
    %c0_0 = arith.constant 0 : index
    %c0_1 = arith.constant 0 : index
    %c0_2 = arith.constant 0 : index
    %0 = vector.load %arg3[%c0, %c0_0, %c0_1, %c0_2] : memref<1x3x128x128xf32, #tpu.memory_space<vmem>>, vector<1x1x128x128xf32>
    %1 = vector.shape_cast %0 : vector<1x1x128x128xf32> to vector<128x128xf32>
    %c0_3 = arith.constant 0 : index
    %c1 = arith.constant 1 : index
    %c0_4 = arith.constant 0 : index
    %c0_5 = arith.constant 0 : index
    %2 = vector.load %arg3[%c0_3, %c1, %c0_4, %c0_5] : memref<1x3x128x128xf32, #tpu.memory_space<vmem>>, vector<1x1x128x128xf32>
    %3 = vector.shape_cast %2 : vector<1x1x128x128xf32> to vector<128x128xf32>
    %c0_6 = arith.constant 0 : index
    %c2 = arith.constant 2 : index
    %c0_7 = arith.constant 0 : index
    %c0_8 = arith.constant 0 : index
    %4 = vector.load %arg3[%c0_6, %c2, %c0_7, %c0_8] : memref<1x3x128x128xf32, #tpu.memory_space<vmem>>, vector<1x1x128x128xf32>
    %5 = vector.shape_cast %4 : vector<1x1x128x128xf32> to vector<128x128xf32>
    %cst = arith.constant 2.990000e-01 : f32
    %6 = vector.broadcast %cst : f32 to vector<128x128xf32>
    %7 = arith.mulf %6, %1 : vector<128x128xf32>
    %cst_9 = arith.constant 5.870000e-01 : f32
    %8 = vector.broadcast %cst_9 : f32 to vector<128x128xf32>
    %9 = arith.mulf %8, %3 : vector<128x128xf32>
    %10 = arith.addf %7, %9 : vector<128x128xf32>
    %cst_10 = arith.constant 1.140000e-01 : f32
    %11 = vector.broadcast %cst_10 : f32 to vector<128x128xf32>
    %12 = arith.mulf %11, %5 : vector<128x128xf32>
    %13 = arith.addf %10, %12 : vector<128x128xf32>
    %cst_11 = arith.constant -1.471300e-01 : f32
    %14 = vector.broadcast %cst_11 : f32 to vector<128x128xf32>
    %15 = arith.mulf %14, %1 : vector<128x128xf32>
    %cst_12 = arith.constant -2.888600e-01 : f32
    %16 = vector.broadcast %cst_12 : f32 to vector<128x128xf32>
    %17 = arith.mulf %16, %3 : vector<128x128xf32>
    %18 = arith.addf %15, %17 : vector<128x128xf32>
    %cst_13 = arith.constant 4.360000e-01 : f32
    %19 = vector.broadcast %cst_13 : f32 to vector<128x128xf32>
    %20 = arith.mulf %19, %5 : vector<128x128xf32>
    %21 = arith.addf %18, %20 : vector<128x128xf32>
    %cst_14 = arith.constant 6.150000e-01 : f32
    %22 = vector.broadcast %cst_14 : f32 to vector<128x128xf32>
    %23 = arith.mulf %22, %1 : vector<128x128xf32>
    %cst_15 = arith.constant -5.149900e-01 : f32
    %24 = vector.broadcast %cst_15 : f32 to vector<128x128xf32>
    %25 = arith.mulf %24, %3 : vector<128x128xf32>
    %26 = arith.addf %23, %25 : vector<128x128xf32>
    %cst_16 = arith.constant -1.000100e-01 : f32
    %27 = vector.broadcast %cst_16 : f32 to vector<128x128xf32>
    %28 = arith.mulf %27, %5 : vector<128x128xf32>
    %29 = arith.addf %26, %28 : vector<128x128xf32>
    %30 = tpu.concatenate %13, %21, %29 in 0 : vector<128x128xf32>, vector<128x128xf32>, vector<128x128xf32> -> vector<384x128xf32>
    %31 = arith.truncf %30 : vector<384x128xf32> to vector<384x128xbf16>
    %c0_17 = arith.constant 0 : index
    %c0_18 = arith.constant 0 : index
    %32 = vector.load %arg5[%c0_17, %c0_18] : memref<384x384xbf16, #tpu.memory_space<vmem>>, vector<384x384xbf16>
    %cst_19 = arith.constant dense<0.000000e+00> : vector<384x128xf32>
    %33 = tpu.matmul %32, %31, %cst_19 {dimension_numbers = #tpu.dot_dimension_numbers<[1], [0], [0], [1], [0, 0, 1, 1], [], []>} : vector<384x384xbf16>, vector<384x128xbf16>, vector<384x128xf32> -> vector<384x128xf32>
    %34 = arith.truncf %33 : vector<384x128xf32> to vector<384x128xbf16>
    %c0_20 = arith.constant 0 : index
    %c0_21 = arith.constant 0 : index
    %35 = vector.load %arg6[%c0_20, %c0_21] : memref<128x128xbf16, #tpu.memory_space<vmem>>, vector<128x128xbf16>
    %cst_22 = arith.constant dense<0.000000e+00> : vector<384x128xf32>
    %36 = tpu.matmul %34, %35, %cst_22 {dimension_numbers = #tpu.dot_dimension_numbers<[1], [0], [0], [1], [0, 0, 1, 1], [], []>} : vector<384x128xbf16>, vector<128x128xbf16>, vector<384x128xf32> -> vector<384x128xf32>
    %c0_23 = arith.constant 0 : index
    %c0_24 = arith.constant 0 : index
    %37 = vector.load %arg4[%c0_23, %c0_24] : memref<384x128xf32, #tpu.memory_space<vmem>>, vector<384x128xf32>
    %38 = arith.mulf %36, %37 : vector<384x128xf32>
    %c0_25 = arith.constant 0 : index
    %c0_26 = arith.constant 0 : index
    %39 = vector.load %arg7[%c0_25, %c0_26] : memref<384x384xbf16, #tpu.memory_space<vmem>>, vector<384x384xbf16>
    %40 = arith.truncf %38 : vector<384x128xf32> to vector<384x128xbf16>
    %cst_27 = arith.constant dense<0.000000e+00> : vector<384x128xf32>
    %41 = tpu.matmul %39, %40, %cst_27 {dimension_numbers = #tpu.dot_dimension_numbers<[1], [0], [0], [1], [0, 0, 1, 1], [], []>} : vector<384x384xbf16>, vector<384x128xbf16>, vector<384x128xf32> -> vector<384x128xf32>
    %42 = arith.truncf %41 : vector<384x128xf32> to vector<384x128xbf16>
    %c0_28 = arith.constant 0 : index
    %c0_29 = arith.constant 0 : index
    %43 = vector.load %arg8[%c0_28, %c0_29] : memref<128x128xbf16, #tpu.memory_space<vmem>>, vector<128x128xbf16>
    %cst_30 = arith.constant dense<0.000000e+00> : vector<384x128xf32>
    %44 = tpu.matmul %42, %43, %cst_30 {dimension_numbers = #tpu.dot_dimension_numbers<[1], [0], [0], [1], [0, 0, 1, 1], [], []>} : vector<384x128xbf16>, vector<128x128xbf16>, vector<384x128xf32> -> vector<384x128xf32>
    %45 = vector.extract_strided_slice %44 {offsets = [0, 0], sizes = [128, 128], strides = [1, 1]} : vector<384x128xf32> to vector<128x128xf32>
    %46 = vector.extract_strided_slice %44 {offsets = [128, 0], sizes = [128, 128], strides = [1, 1]} : vector<384x128xf32> to vector<128x128xf32>
    %47 = vector.extract_strided_slice %44 {offsets = [256, 0], sizes = [128, 128], strides = [1, 1]} : vector<384x128xf32> to vector<128x128xf32>
    %cst_31 = arith.constant 1.139830e+00 : f32
    %48 = vector.broadcast %cst_31 : f32 to vector<128x128xf32>
    %49 = arith.mulf %48, %47 : vector<128x128xf32>
    %50 = arith.addf %45, %49 : vector<128x128xf32>
    %c0_32 = arith.constant 0 : index
    %c0_33 = arith.constant 0 : index
    %c0_34 = arith.constant 0 : index
    %c0_35 = arith.constant 0 : index
    %51 = vector.load %arg9[%c0_32, %c0_33, %c0_34, %c0_35] : memref<1x3x128x128xf32, #tpu.memory_space<vmem>>, vector<1x1x128x128xf32>
    %52 = vector.shape_cast %51 : vector<1x1x128x128xf32> to vector<128x128xf32>
    %53 = vector.shape_cast %50 : vector<128x128xf32> to vector<1x1x128x128xf32>
    tpu.vector_store %arg9[%c0_32, %c0_33, %c0_34, %c0_35], %53 {strides = array<i32>} : memref<1x3x128x128xf32, #tpu.memory_space<vmem>>, vector<1x1x128x128xf32>,
    %cst_36 = arith.constant -3.946500e-01 : f32
    %54 = vector.broadcast %cst_36 : f32 to vector<128x128xf32>
    %55 = arith.mulf %54, %46 : vector<128x128xf32>
    %56 = arith.addf %45, %55 : vector<128x128xf32>
    %cst_37 = arith.constant -5.806000e-01 : f32
    %57 = vector.broadcast %cst_37 : f32 to vector<128x128xf32>
    %58 = arith.mulf %57, %47 : vector<128x128xf32>
    %59 = arith.addf %56, %58 : vector<128x128xf32>
    %c0_38 = arith.constant 0 : index
    %c1_39 = arith.constant 1 : index
    %c0_40 = arith.constant 0 : index
    %c0_41 = arith.constant 0 : index
    %60 = vector.load %arg9[%c0_38, %c1_39, %c0_40, %c0_41] : memref<1x3x128x128xf32, #tpu.memory_space<vmem>>, vector<1x1x128x128xf32>
    %61 = vector.shape_cast %60 : vector<1x1x128x128xf32> to vector<128x128xf32>
    %62 = vector.shape_cast %59 : vector<128x128xf32> to vector<1x1x128x128xf32>
    tpu.vector_store %arg9[%c0_38, %c1_39, %c0_40, %c0_41], %62 {strides = array<i32>} : memref<1x3x128x128xf32, #tpu.memory_space<vmem>>, vector<1x1x128x128xf32>,
    %cst_42 = arith.constant 2.032110e+00 : f32
    %63 = vector.broadcast %cst_42 : f32 to vector<128x128xf32>
    %64 = arith.mulf %63, %46 : vector<128x128xf32>
    %65 = arith.addf %45, %64 : vector<128x128xf32>
    %c0_43 = arith.constant 0 : index
    %c2_44 = arith.constant 2 : index
    %c0_45 = arith.constant 0 : index
    %c0_46 = arith.constant 0 : index
    %66 = vector.load %arg9[%c0_43, %c2_44, %c0_45, %c0_46] : memref<1x3x128x128xf32, #tpu.memory_space<vmem>>, vector<1x1x128x128xf32>
    %67 = vector.shape_cast %66 : vector<1x1x128x128xf32> to vector<128x128xf32>
    %68 = vector.shape_cast %65 : vector<128x128xf32> to vector<1x1x128x128xf32>
    tpu.vector_store %arg9[%c0_43, %c2_44, %c0_45, %c0_46], %68 {strides = array<i32>} : memref<1x3x128x128xf32, #tpu.memory_space<vmem>>, vector<1x1x128x128xf32>,
    return
  }
  func.func @transform_0(%arg0: i32, %arg1: i32, %arg2: i32) -> (i32, i32, i32, i32) {
    %c0_i32 = arith.constant 0 : i32
    %c0_i32_0 = arith.constant 0 : i32
    return %arg0, %c0_i32, %arg1, %arg2 : i32, i32, i32, i32
  }
  func.func @transform_1(%arg0: i32, %arg1: i32, %arg2: i32) -> (i32, i32) {
    %c0_i32 = arith.constant 0 : i32
    %c0_i32_0 = arith.constant 0 : i32
    %c0_i32_1 = arith.constant 0 : i32
    return %c0_i32, %c0_i32_0 : i32, i32
  }
  func.func @transform_2(%arg0: i32, %arg1: i32, %arg2: i32) -> (i32, i32) {
    %c0_i32 = arith.constant 0 : i32
    %c0_i32_0 = arith.constant 0 : i32
    %c0_i32_1 = arith.constant 0 : i32
    return %c0_i32, %c0_i32_0 : i32, i32
  }
  func.func @transform_3(%arg0: i32, %arg1: i32, %arg2: i32) -> (i32, i32) {
    %c0_i32 = arith.constant 0 : i32
    %c0_i32_0 = arith.constant 0 : i32
    %c0_i32_1 = arith.constant 0 : i32
    return %c0_i32, %c0_i32_0 : i32, i32
  }
  func.func @transform_4(%arg0: i32, %arg1: i32, %arg2: i32) -> (i32, i32) {
    %c0_i32 = arith.constant 0 : i32
    %c0_i32_0 = arith.constant 0 : i32
    %c0_i32_1 = arith.constant 0 : i32
    return %c0_i32, %c0_i32_0 : i32, i32
  }
  func.func @transform_5(%arg0: i32, %arg1: i32, %arg2: i32) -> (i32, i32) {
    %c0_i32 = arith.constant 0 : i32
    %c0_i32_0 = arith.constant 0 : i32
    %c0_i32_1 = arith.constant 0 : i32
    return %c0_i32, %c0_i32_0 : i32, i32
  }
  func.func @transform_6(%arg0: i32, %arg1: i32, %arg2: i32) -> (i32, i32, i32, i32) {
    %c0_i32 = arith.constant 0 : i32
    %c0_i32_0 = arith.constant 0 : i32
    return %arg0, %c0_i32, %arg1, %arg2 : i32, i32, i32, i32
  }
}

</mosaic_0001>

<llo_original>
// kernel: jpeg_compression.1
$region0: #{jpeg_compression.1}
  #allocation0 [shape = 'u32[]', space=smem, size = 0x4, offset = 0x4, fixed_abs, tag = 'smem constant byte address 0x4 - core index']
  #allocation1 [shape = 'u32[72,128]{1,0:T(1,128)}', space=vmem, size = 0x9000, scoped, tag = 'internal scratch']
  %s0 = inlined_call_operand.vmem [shape: f32[2,3,128,128], index: 0, kind: input, shape index: {}]
  %s1 = inlined_call_operand.hbm [shape: f32[384,128], index: 1, kind: input, shape index: {}]
  %s2 = inlined_call_operand.hbm [shape: bf16[384,384], index: 2, kind: input, shape index: {}]
  %s3 = inlined_call_operand.vmem [shape: bf16[128,128], index: 3, kind: input, shape index: {}]
  %s4 = inlined_call_operand.vmem [shape: bf16[384,384], index: 4, kind: input, shape index: {}]
  %s5 = inlined_call_operand.vmem [shape: bf16[128,128], index: 5, kind: input, shape index: {}]
  %s6 = inlined_call_operand.vmem [shape: f32[2,3,128,128], index: 6, kind: output, shape index: {}]
  %s7 = sld [smem:[#allocation0]]
  $region65: #{jpeg_compression.1} parent=0
    _
  %s9 = ssub.s32 1, %s7
  %s10 = scalar_select 0, %s9, %s7
  $region1: #{jpeg_compression.1} parent=0
    #allocation2 [shape = 'u8[196608]{0}', space=vmem, size = 0x30000, scoped, tag = 'input window, operand 1, single buffered']
    #allocation3 [shape = 's32[2]{0}', space=sflag, size = 0x8, scoped, tag = 'scoped memory for jpeg_compression.1']
    #allocation4 [shape = 'u8[294912]{0}', space=vmem, size = 0x48000, scoped, tag = 'input window, operand 2, single buffered']
    #allocation5 [shape = 's32[1]{0}', space=sflag, size = 0x4, scoped, tag = 'scoped memory for jpeg_compression.1']
    %11 = vsyncpa [#allocation3], 0
    %12 = vsyncpa [#allocation5], 0
    loop: start=0, step=1, limit=4
    $region2: #{jpeg_compression.1} parent=1 // loop_pre_header
      _
    $region3: #{jpeg_compression.1} parent=1 // loop_header
      %s14 = sphi 0, %s18
      %p15 = scmp.ge.s32.totalorder %s14, 4
      %s21 = sphi 0, %s40
      %s22 = sphi 0, %s36
      %s23 = sphi 0, %s32
      %s24 = sphi 0, %s21
      %s25 = sphi 0, %s22
      %s26 = sphi 0, %s23
      %s27 = sphi 0, %s24
      %s28 = sphi 0, %s25
      %s29 = sphi 0, %s26
      %s47 = sphi 0, %s49
      %s50 = sphi 0, %s47
      %s51 = sphi 0, %s50
      %s67 = sphi 0, %s51
      %s71 = sphi 0, %s71
      %s73 = sphi 0, %s71
      %s74 = sphi 0, %s73
      %s88 = sphi 0, %s74
      %s92 = sphi 0, %s92
      %s94 = sphi 0, %s92
      %s95 = sphi 0, %s94
      %s109 = sphi 0, %s95
      %s113 = sphi 0, %s113
      %s115 = sphi 0, %s113
      %s116 = sphi 0, %s115
      %s130 = sphi 0, %s116
      %s134 = sphi 0, %s134
      %s136 = sphi 0, %s134
      %s137 = sphi 0, %s136
      %s151 = sphi 0, %s137
      %s155 = sphi 0, %s155
      %s157 = sphi 0, %s155
      %s158 = sphi 0, %s157
      %s172 = sphi 0, %s158
      %s182 = sphi 0, %s184
      %s185 = sphi 0, %s182
      %s186 = sphi 0, %s185
      %s202 = sphi 0, %s186
    $region4: #{jpeg_compression.1} parent=1 // loop_header_branch
      %17 = sbr.rel (%p15) target = $region8
    $region5: #{jpeg_compression.1} parent=1 // loop_body
      %s19 = ssub.s32 %s14, 1
      %s20 = ssub.s32 %s14, 2
      %s30 = sadd.s32 1, %s23
      %p31 = scmp.ge.s32.totalorder %s30, 1
      %s32 = scalar_select %p31, 0, %s30
      %s33 = sadd.s32 1, %s22
      %s34 = scalar_select %p31, %s33, %s22
      %p35 = scmp.ge.s32.totalorder %s34, 1
      %s36 = scalar_select %p35, 0, %s34
      %s37 = sadd.s32 1, %s21
      %s38 = scalar_select %p35, %s37, %s21
      %p39 = scmp.ge.s32.totalorder %s38, 2
      %s40 = scalar_select %p39, 0, %s38
      %s41 = ssub.s32 %s21, %s40
      %s42 = ssub.s32 %s22, %s36
      %s43 = sor.u32 %s41, %s42
      %s44 = ssub.s32 %s23, %s32
      %s45 = sor.u32 %s43, %s44
      %p46 = scmp.eq.s32.totalorder %s45, 0
      %s48 = sadd.s32 %s47, 1
      %s49 = scalar_select %p46, %s47, %s48
      %p52 = pneg %p46
      %p53 = scmp.eq.s32.totalorder %s14, 1
      %p54 = por %p52, %p53
      %p55 = scmp.ne.s32.totalorder %s47, %s50
      %p56 = scmp.eq.s32.totalorder %s14, 0
      %p57 = por %p55, %p56
      %p58 = scmp.ne.s32.totalorder %s47, %s50
      %p59 = scmp.eq.s32.totalorder %s19, 1
      %p60 = por %p58, %p59
      %p61 = scmp.ne.s32.totalorder %s50, %s51
      %p62 = scmp.eq.s32.totalorder %s19, 0
      %p63 = por %p61, %p62
      %p64 = scmp.ne.s32.totalorder %s50, %s51
      %p65 = scmp.eq.s32.totalorder %s20, 1
      %p66 = por %p64, %p65
      %p68 = scmp.ne.s32.totalorder %s51, %s67
      %p69 = scmp.eq.s32.totalorder %s20, 0
      %p70 = por %p68, %p69
      %s72 = sadd.s32 %s71, 1
      %p75 = scmp.eq.s32.totalorder %s14, 1
      %p76 = scmp.ne.s32.totalorder %s71, %s73
      %p77 = scmp.eq.s32.totalorder %s14, 0
      %p78 = por %p76, %p77
      %p79 = scmp.ne.s32.totalorder %s71, %s73
      %p80 = scmp.eq.s32.totalorder %s19, 1
      %p81 = por %p79, %p80
      %p82 = scmp.ne.s32.totalorder %s73, %s74
      %p83 = scmp.eq.s32.totalorder %s19, 0
      %p84 = por %p82, %p83
      %p85 = scmp.ne.s32.totalorder %s73, %s74
      %p86 = scmp.eq.s32.totalorder %s20, 1
      %p87 = por %p85, %p86
      %p89 = scmp.ne.s32.totalorder %s74, %s88
      %p90 = scmp.eq.s32.totalorder %s20, 0
      %p91 = por %p89, %p90
      %s93 = sadd.s32 %s92, 1
      %p96 = scmp.eq.s32.totalorder %s14, 1
      %p97 = scmp.ne.s32.totalorder %s92, %s94
      %p98 = scmp.eq.s32.totalorder %s14, 0
      %p99 = por %p97, %p98
      %p100 = scmp.ne.s32.totalorder %s92, %s94
      %p101 = scmp.eq.s32.totalorder %s19, 1
      %p102 = por %p100, %p101
      %p103 = scmp.ne.s32.totalorder %s94, %s95
      %p104 = scmp.eq.s32.totalorder %s19, 0
      %p105 = por %p103, %p104
      %p106 = scmp.ne.s32.totalorder %s94, %s95
      %p107 = scmp.eq.s32.totalorder %s20, 1
      %p108 = por %p106, %p107
      %p110 = scmp.ne.s32.totalorder %s95, %s109
      %p111 = scmp.eq.s32.totalorder %s20, 0
      %p112 = por %p110, %p111
      %s114 = sadd.s32 %s113, 1
      %p117 = scmp.eq.s32.totalorder %s14, 1
      %p118 = scmp.ne.s32.totalorder %s113, %s115
      %p119 = scmp.eq.s32.totalorder %s14, 0
      %p120 = por %p118, %p119
      %p121 = scmp.ne.s32.totalorder %s113, %s115
      %p122 = scmp.eq.s32.totalorder %s19, 1
      %p123 = por %p121, %p122
      %p124 = scmp.ne.s32.totalorder %s115, %s116
      %p125 = scmp.eq.s32.totalorder %s19, 0
      %p126 = por %p124, %p125
      %p127 = scmp.ne.s32.totalorder %s115, %s116
      %p128 = scmp.eq.s32.totalorder %s20, 1
      %p129 = por %p127, %p128
      %p131 = scmp.ne.s32.totalorder %s116, %s130
      %p132 = scmp.eq.s32.totalorder %s20, 0
      %p133 = por %p131, %p132
      %s135 = sadd.s32 %s134, 1
      %p138 = scmp.eq.s32.totalorder %s14, 1
      %p139 = scmp.ne.s32.totalorder %s134, %s136
      %p140 = scmp.eq.s32.totalorder %s14, 0
      %p141 = por %p139, %p140
      %p142 = scmp.ne.s32.totalorder %s134, %s136
      %p143 = scmp.eq.s32.totalorder %s19, 1
      %p144 = por %p142, %p143
      %p145 = scmp.ne.s32.totalorder %s136, %s137
      %p146 = scmp.eq.s32.totalorder %s19, 0
      %p147 = por %p145, %p146
      %p148 = scmp.ne.s32.totalorder %s136, %s137
      %p149 = scmp.eq.s32.totalorder %s20, 1
      %p150 = por %p148, %p149
      %p152 = scmp.ne.s32.totalorder %s137, %s151
      %p153 = scmp.eq.s32.totalorder %s20, 0
      %p154 = por %p152, %p153
      %s156 = sadd.s32 %s155, 1
      %p159 = scmp.eq.s32.totalorder %s14, 1
      %p160 = scmp.ne.s32.totalorder %s155, %s157
      %p161 = scmp.eq.s32.totalorder %s14, 0
      %p162 = por %p160, %p161
      %p163 = scmp.ne.s32.totalorder %s155, %s157
      %p164 = scmp.eq.s32.totalorder %s19, 1
      %p165 = por %p163, %p164
      %p166 = scmp.ne.s32.totalorder %s157, %s158
      %p167 = scmp.eq.s32.totalorder %s19, 0
      %p168 = por %p166, %p167
      %p169 = scmp.ne.s32.totalorder %s157, %s158
      %p170 = scmp.eq.s32.totalorder %s20, 1
      %p171 = por %p169, %p170
      %p173 = scmp.ne.s32.totalorder %s158, %s172
      %p174 = scmp.eq.s32.totalorder %s20, 0
      %p175 = por %p173, %p174
      %s176 = ssub.s32 %s21, %s40
      %s177 = ssub.s32 %s22, %s36
      %s178 = sor.u32 %s176, %s177
      %s179 = ssub.s32 %s23, %s32
      %s180 = sor.u32 %s178, %s179
      %p181 = scmp.eq.s32.totalorder %s180, 0
      %s183 = sadd.s32 %s182, 1
      %s184 = scalar_select %p181, %s182, %s183
      %p187 = pneg %p181
      %p188 = scmp.eq.s32.totalorder %s14, 1
      %p189 = por %p187, %p188
      %p190 = scmp.ne.s32.totalorder %s182, %s185
      %p191 = scmp.eq.s32.totalorder %s14, 0
      %p192 = por %p190, %p191
      %p193 = scmp.ne.s32.totalorder %s182, %s185
      %p194 = scmp.eq.s32.totalorder %s19, 1
      %p195 = por %p193, %p194
      %p196 = scmp.ne.s32.totalorder %s185, %s186
      %p197 = scmp.eq.s32.totalorder %s19, 0
      %p198 = por %p196, %p197
      %p199 = scmp.ne.s32.totalorder %s185, %s186
      %p200 = scmp.eq.s32.totalorder %s20, 1
      %p201 = por %p199, %p200
      %p203 = scmp.ne.s32.totalorder %s186, %s202
      %p204 = scmp.eq.s32.totalorder %s20, 0
      %p205 = por %p203, %p204
      %p206 = scmp.le.s32.totalorder 1, %s14
      %p207 = scmp.lt.s32.totalorder %s14, 3
      %p208 = pnand %p206, %p207
      %p209 = pneg %p208
      // Predicated region
      $region9: #{jpeg_compression.1} parent=5 // pred_check
        _
      $region10: #{jpeg_compression.1} parent=5 // pred_check_branch
        %211 = sbr.rel (%p208) target = $region12
      $region11: #{jpeg_compression.1} parent=5 // pred_region
        %s212 = ssub.s32 %s14, 1
        // Predicated region
        $region13: #{jpeg_compression.1} parent=11 // pred_check
          %p213 = pneg %p84
        $region14: #{jpeg_compression.1} parent=11 // pred_check_branch
          %215 = sbr.rel (%p213) target = $region16
        $region15: #{jpeg_compression.1} parent=11 // pred_region
          %217 = vsyncadd [#allocation3], 0
          %s218 = sshll.u32 %s1, 4
          %s219 = int_to_ptr.hbm [resolvable:$true] %s218
          %s220 = sshll.u32 [#allocation2], 4
          %s221 = int_to_ptr.vmem [resolvable:$true] %s220
          %226 = dma.hbm_to_vmem [thread:$0]  %s219, 6144, %s221, [#allocation3], 128, 128, 8
        $region16: #{jpeg_compression.1} parent=11 // pred_fallthru
          _
        // Predicated region
        $region17: #{jpeg_compression.1} parent=11 // pred_check
          %p227 = pneg %p105
        $region18: #{jpeg_compression.1} parent=11 // pred_check_branch
          %229 = sbr.rel (%p227) target = $region20
        $region19: #{jpeg_compression.1} parent=11 // pred_region
          %231 = vsyncadd [#allocation5], 0
          %s232 = sshll.u32 %s2, 4
          %s233 = int_to_ptr.hbm [resolvable:$true] %s232
          %s234 = sshll.u32 [#allocation4], 4
          %s235 = int_to_ptr.vmem [resolvable:$true] %s234
          %240 = dma.hbm_to_vmem [thread:$0]  %s233, 9216, %s235, [#allocation5], 192, 192, 12
        $region20: #{jpeg_compression.1} parent=11 // pred_fallthru
          _
        // Predicated region
        $region21: #{jpeg_compression.1} parent=11 // pred_check
          %p241 = pneg %p126
        $region22: #{jpeg_compression.1} parent=11 // pred_check_branch
          %243 = sbr.rel (%p241) target = $region24
        $region23: #{jpeg_compression.1} parent=11 // pred_region
          _
        $region24: #{jpeg_compression.1} parent=11 // pred_fallthru
          _
        // Predicated region
        $region25: #{jpeg_compression.1} parent=11 // pred_check
          %p244 = pneg %p147
        $region26: #{jpeg_compression.1} parent=11 // pred_check_branch
          %246 = sbr.rel (%p244) target = $region28
        $region27: #{jpeg_compression.1} parent=11 // pred_region
          _
        $region28: #{jpeg_compression.1} parent=11 // pred_fallthru
          _
        // Predicated region
        $region29: #{jpeg_compression.1} parent=11 // pred_check
          %p247 = pneg %p168
        $region30: #{jpeg_compression.1} parent=11 // pred_check_branch
          %249 = sbr.rel (%p247) target = $region32
        $region31: #{jpeg_compression.1} parent=11 // pred_region
          _
        $region32: #{jpeg_compression.1} parent=11 // pred_fallthru
          _
      $region12: #{jpeg_compression.1} parent=5 // pred_fallthru
        _
      %p250 = scmp.lt.s32.totalorder %s14, 2
      // Predicated region
      $region33: #{jpeg_compression.1} parent=5 // pred_check
        %p251 = pneg %p250
      $region34: #{jpeg_compression.1} parent=5 // pred_check_branch
        %253 = sbr.rel (%p251) target = $region36
      $region35: #{jpeg_compression.1} parent=5 // pred_region
        // Predicated region
        $region37: #{jpeg_compression.1} parent=35 // pred_check
          %p254 = pneg %p57
        $region38: #{jpeg_compression.1} parent=35 // pred_check_branch
          %256 = sbr.rel (%p254) target = $region40
        $region39: #{jpeg_compression.1} parent=35 // pred_region
          %s257 = smul.u32 16, %s22
          %p258 = scmp.lt.s32.totalorder %s21, 1
          %s259 = scalar_select %p258, %s21, 1
          %p260 = scmp.lt.s32.totalorder %s257, 15
          %s261 = scalar_select %p260, %s257, 15
          %p262 = scmp.lt.s32.totalorder %s23, 0
          %s263 = scalar_select %p262, %s23, 0
          %s264 = sadd.s32 %s263, %s261
          %s265 = smul.addr %s259, 48
          %s266 = sadd.s32 %s264, %s265
          %s267 = smul.addr %s266, 8
          %s268 = scalar_lea.vmem %s0, %s267
          %s269 = smul.u32 16, %s22
        $region40: #{jpeg_compression.1} parent=35 // pred_fallthru
          _
      $region36: #{jpeg_compression.1} parent=5 // pred_fallthru
        _
      %p270 = scmp.le.s32.totalorder 1, %s14
      %p271 = scmp.lt.s32.totalorder %s14, 3
      %p272 = pnand %p270, %p271
      %p273 = pneg %p272
      // Predicated region
      $region41: #{jpeg_compression.1} parent=5 // pred_check
        _
      $region42: #{jpeg_compression.1} parent=5 // pred_check_branch
        %275 = sbr.rel (%p272) target = $region44
      $region43: #{jpeg_compression.1} parent=5 // pred_region
        %s276 = ssub.s32 %s14, 1
        // Predicated region
        $region45: #{jpeg_compression.1} parent=43 // pred_check
          %p277 = pneg %p84
        $region46: #{jpeg_compression.1} parent=43 // pred_check_branch
          %279 = sbr.rel (%p277) target = $region48
        $region47: #{jpeg_compression.1} parent=43 // pred_region
          %281 = dma.done [#allocation3], 6144
        $region48: #{jpeg_compression.1} parent=43 // pred_fallthru
          _
        // Predicated region
        $region49: #{jpeg_compression.1} parent=43 // pred_check
          %p282 = pneg %p105
        $region50: #{jpeg_compression.1} parent=43 // pred_check_branch
          %284 = sbr.rel (%p282) target = $region52
        $region51: #{jpeg_compression.1} parent=43 // pred_region
          %286 = dma.done [#allocation5], 9216
        $region52: #{jpeg_compression.1} parent=43 // pred_fallthru
          _
        %s287 = smul.u32 16, %s25
        %p288 = scmp.lt.s32.totalorder %s24, 1
        %s289 = scalar_select %p288, %s24, 1
        %p290 = scmp.lt.s32.totalorder %s287, 15
        %s291 = scalar_select %p290, %s287, 15
        %p292 = scmp.lt.s32.totalorder %s26, 0
        %s293 = scalar_select %p292, %s26, 0
        %s294 = sadd.s32 %s293, %s291
        %s295 = smul.addr %s289, 48
        %s296 = sadd.s32 %s294, %s295
        %s297 = smul.addr %s296, 8
        %s298 = scalar_lea.vmem %s0, %s297
        %p299 = pneg %p63
        %p300 = pneg %p60
        %p301 = pneg %p84
        %p302 = pneg %p81
        %p303 = pneg %p105
        %p304 = pneg %p102
        %p305 = pneg %p126
        %p306 = pneg %p123
        %p307 = pneg %p147
        %p308 = pneg %p144
        %p309 = pneg %p168
        %p310 = pneg %p165
        %p311 = pneg %p198
        %p312 = pneg %p195
        %s313 = smul.u32 16, %s25
        %p314 = scmp.lt.s32.totalorder %s24, 1
        %s315 = scalar_select %p314, %s24, 1
        %p316 = scmp.lt.s32.totalorder %s313, 15
        %s317 = scalar_select %p316, %s313, 15
        %p318 = scmp.lt.s32.totalorder %s26, 0
        %s319 = scalar_select %p318, %s26, 0
        %s320 = sadd.s32 %s319, %s317
        %s321 = smul.addr %s315, 48
        %s322 = sadd.s32 %s320, %s321
        %s323 = smul.addr %s322, 8
        %s324 = scalar_lea.vmem %s6, %s323
        %s325 = smul.u32 16, %s25
        %p326 = scmp.lt.s32.totalorder %s24, 1
        %s327 = scalar_select %p326, %s24, 1
        %p328 = scmp.lt.s32.totalorder %s325, 15
        %s329 = scalar_select %p328, %s325, 15
        %p330 = scmp.lt.s32.totalorder %s26, 0
        %s331 = scalar_select %p330, %s26, 0
        %s332 = sadd.s32 %s331, %s329
        %s333 = smul.addr %s327, 48
        %s334 = sadd.s32 %s332, %s333
        %s335 = smul.addr %s334, 8
        %s336 = scalar_lea.vmem %s0, %s335
        %s337 = smul.u32 16, %s25
        %s338 = smul.u32 16, %s25
        %p339 = scmp.lt.s32.totalorder %s24, 1
        %s340 = scalar_select %p339, %s24, 1
        %p341 = scmp.lt.s32.totalorder %s338, 15
        %s342 = scalar_select %p341, %s338, 15
        %p343 = scmp.lt.s32.totalorder %s26, 0
        %s344 = scalar_select %p343, %s26, 0
        %s345 = sadd.s32 %s344, %s342
        %s346 = smul.addr %s340, 48
        %s347 = sadd.s32 %s345, %s346
        %s348 = smul.addr %s347, 8
        %s349 = scalar_lea.vmem %s6, %s348
        %s350 = smul.u32 16, %s25
        %v351 = vld [vmem:[%s336] sm:$0xff]
        %v352 = vld [vmem:[%s336 + $0x8] sm:$0xff]
        %v353 = vld [vmem:[%s336 + $0x10] sm:$0xff]
        %v354 = vld [vmem:[%s336 + $0x18] sm:$0xff]
        %v355 = vld [vmem:[%s336 + $0x20] sm:$0xff]
        %v356 = vld [vmem:[%s336 + $0x28] sm:$0xff]
        %v357 = vld [vmem:[%s336 + $0x30] sm:$0xff]
        %v358 = vld [vmem:[%s336 + $0x38] sm:$0xff]
        %v359 = vld [vmem:[%s336 + $0x40] sm:$0xff]
        %v360 = vld [vmem:[%s336 + $0x48] sm:$0xff]
        %v361 = vld [vmem:[%s336 + $0x50] sm:$0xff]
        %v362 = vld [vmem:[%s336 + $0x58] sm:$0xff]
        %v363 = vld [vmem:[%s336 + $0x60] sm:$0xff]
        %v364 = vld [vmem:[%s336 + $0x68] sm:$0xff]
        %v365 = vld [vmem:[%s336 + $0x70] sm:$0xff]
        %v366 = vld [vmem:[%s336 + $0x78] sm:$0xff]
        %s367 = scalar_lea.vmem %s336, 128
        %v368 = vld [vmem:[%s367] sm:$0xff]
        %v369 = vld [vmem:[%s367 + $0x8] sm:$0xff]
        %v370 = vld [vmem:[%s367 + $0x10] sm:$0xff]
        %v371 = vld [vmem:[%s367 + $0x18] sm:$0xff]
        %v372 = vld [vmem:[%s367 + $0x20] sm:$0xff]
        %v373 = vld [vmem:[%s367 + $0x28] sm:$0xff]
        %v374 = vld [vmem:[%s367 + $0x30] sm:$0xff]
        %v375 = vld [vmem:[%s367 + $0x38] sm:$0xff]
        %v376 = vld [vmem:[%s367 + $0x40] sm:$0xff]
        %v377 = vld [vmem:[%s367 + $0x48] sm:$0xff]
        %v378 = vld [vmem:[%s367 + $0x50] sm:$0xff]
        %v379 = vld [vmem:[%s367 + $0x58] sm:$0xff]
        %v380 = vld [vmem:[%s367 + $0x60] sm:$0xff]
        %v381 = vld [vmem:[%s367 + $0x68] sm:$0xff]
        %v382 = vld [vmem:[%s367 + $0x70] sm:$0xff]
        %v383 = vld [vmem:[%s367 + $0x78] sm:$0xff]
        %s384 = scalar_lea.vmem %s336, 256
        %v385 = vld [vmem:[%s384] sm:$0xff]
        %v386 = vld [vmem:[%s384 + $0x8] sm:$0xff]
        %v387 = vld [vmem:[%s384 + $0x10] sm:$0xff]
        %v388 = vld [vmem:[%s384 + $0x18] sm:$0xff]
        %v389 = vld [vmem:[%s384 + $0x20] sm:$0xff]
        %v390 = vld [vmem:[%s384 + $0x28] sm:$0xff]
        %v391 = vld [vmem:[%s384 + $0x30] sm:$0xff]
        %v392 = vld [vmem:[%s384 + $0x38] sm:$0xff]
        %v393 = vld [vmem:[%s384 + $0x40] sm:$0xff]
        %v394 = vld [vmem:[%s384 + $0x48] sm:$0xff]
        %v395 = vld [vmem:[%s384 + $0x50] sm:$0xff]
        %v396 = vld [vmem:[%s384 + $0x58] sm:$0xff]
        %v397 = vld [vmem:[%s384 + $0x60] sm:$0xff]
        %v398 = vld [vmem:[%s384 + $0x68] sm:$0xff]
        %v399 = vld [vmem:[%s384 + $0x70] sm:$0xff]
        %v400 = vld [vmem:[%s384 + $0x78] sm:$0xff]
        %v401 = vmul.f32 %v351, 0.299
        %v402 = vmul.f32 %v352, 0.299
        %v403 = vmul.f32 %v353, 0.299
        %v404 = vmul.f32 %v354, 0.299
        %v405 = vmul.f32 %v355, 0.299
        %v406 = vmul.f32 %v356, 0.299
        %v407 = vmul.f32 %v357, 0.299
        %v408 = vmul.f32 %v358, 0.299
        %v409 = vmul.f32 %v359, 0.299
        %v410 = vmul.f32 %v360, 0.299
        %v411 = vmul.f32 %v361, 0.299
        %v412 = vmul.f32 %v362, 0.299
        %v413 = vmul.f32 %v363, 0.299
        %v414 = vmul.f32 %v364, 0.299
        %v415 = vmul.f32 %v365, 0.299
        %v416 = vmul.f32 %v366, 0.299
        %v417 = vmul.f32 %v368, 0.587
        %v418 = vmul.f32 %v369, 0.587
        %v419 = vmul.f32 %v370, 0.587
        %v420 = vmul.f32 %v371, 0.587
        %v421 = vmul.f32 %v372, 0.587
        %v422 = vmul.f32 %v373, 0.587
        %v423 = vmul.f32 %v374, 0.587
        %v424 = vmul.f32 %v375, 0.587
        %v425 = vmul.f32 %v376, 0.587
        %v426 = vmul.f32 %v377, 0.587
        %v427 = vmul.f32 %v378, 0.587
        %v428 = vmul.f32 %v379, 0.587
        %v429 = vmul.f32 %v380, 0.587
        %v430 = vmul.f32 %v381, 0.587
        %v431 = vmul.f32 %v382, 0.587
        %v432 = vmul.f32 %v383, 0.587
        %v433 = vadd.f32 %v401, %v417
        %v434 = vadd.f32 %v402, %v418
        %v435 = vadd.f32 %v403, %v419
        %v436 = vadd.f32 %v404, %v420
        %v437 = vadd.f32 %v405, %v421
        %v438 = vadd.f32 %v406, %v422
        %v439 = vadd.f32 %v407, %v423
        %v440 = vadd.f32 %v408, %v424
        %v441 = vadd.f32 %v409, %v425
        %v442 = vadd.f32 %v410, %v426
        %v443 = vadd.f32 %v411, %v427
        %v444 = vadd.f32 %v412, %v428
        %v445 = vadd.f32 %v413, %v429
        %v446 = vadd.f32 %v414, %v430
        %v447 = vadd.f32 %v415, %v431
        %v448 = vadd.f32 %v416, %v432
        %v449 = vmul.f32 %v385, 0.114
        %v450 = vmul.f32 %v386, 0.114
        %v451 = vmul.f32 %v387, 0.114
        %v452 = vmul.f32 %v388, 0.114
        %v453 = vmul.f32 %v389, 0.114
        %v454 = vmul.f32 %v390, 0.114
        %v455 = vmul.f32 %v391, 0.114
        %v456 = vmul.f32 %v392, 0.114
        %v457 = vmul.f32 %v393, 0.114
        %v458 = vmul.f32 %v394, 0.114
        %v459 = vmul.f32 %v395, 0.114
        %v460 = vmul.f32 %v396, 0.114
        %v461 = vmul.f32 %v397, 0.114
        %v462 = vmul.f32 %v398, 0.114
        %v463 = vmul.f32 %v399, 0.114
        %v464 = vmul.f32 %v400, 0.114
        %v465 = vadd.f32 %v433, %v449
        %v466 = vadd.f32 %v434, %v450
        %v467 = vadd.f32 %v435, %v451
        %v468 = vadd.f32 %v436, %v452
        %v469 = vadd.f32 %v437, %v453
        %v470 = vadd.f32 %v438, %v454
        %v471 = vadd.f32 %v439, %v455
        %v472 = vadd.f32 %v440, %v456
        %v473 = vadd.f32 %v441, %v457
        %v474 = vadd.f32 %v442, %v458
        %v475 = vadd.f32 %v443, %v459
        %v476 = vadd.f32 %v444, %v460
        %v477 = vadd.f32 %v445, %v461
        %v478 = vadd.f32 %v446, %v462
        %v479 = vadd.f32 %v447, %v463
        %v480 = vadd.f32 %v448, %v464
        %v481 = vmul.f32 %v351, -0.14713
        %v482 = vmul.f32 %v352, -0.14713
        %v483 = vmul.f32 %v353, -0.14713
        %v484 = vmul.f32 %v354, -0.14713
        %v485 = vmul.f32 %v355, -0.14713
        %v486 = vmul.f32 %v356, -0.14713
        %v487 = vmul.f32 %v357, -0.14713
        %v488 = vmul.f32 %v358, -0.14713
        %v489 = vmul.f32 %v359, -0.14713
        %v490 = vmul.f32 %v360, -0.14713
        %v491 = vmul.f32 %v361, -0.14713
        %v492 = vmul.f32 %v362, -0.14713
        %v493 = vmul.f32 %v363, -0.14713
        %v494 = vmul.f32 %v364, -0.14713
        %v495 = vmul.f32 %v365, -0.14713
        %v496 = vmul.f32 %v366, -0.14713
        %v497 = vmul.f32 %v368, -0.28886
        %v498 = vmul.f32 %v369, -0.28886
        %v499 = vmul.f32 %v370, -0.28886
        %v500 = vmul.f32 %v371, -0.28886
        %v501 = vmul.f32 %v372, -0.28886
        %v502 = vmul.f32 %v373, -0.28886
        %v503 = vmul.f32 %v374, -0.28886
        %v504 = vmul.f32 %v375, -0.28886
        %v505 = vmul.f32 %v376, -0.28886
        %v506 = vmul.f32 %v377, -0.28886
        %v507 = vmul.f32 %v378, -0.28886
        %v508 = vmul.f32 %v379, -0.28886
        %v509 = vmul.f32 %v380, -0.28886
        %v510 = vmul.f32 %v381, -0.28886
        %v511 = vmul.f32 %v382, -0.28886
        %v512 = vmul.f32 %v383, -0.28886
        %v513 = vadd.f32 %v481, %v497
        %v514 = vadd.f32 %v482, %v498
        %v515 = vadd.f32 %v483, %v499
        %v516 = vadd.f32 %v484, %v500
        %v517 = vadd.f32 %v485, %v501
        %v518 = vadd.f32 %v486, %v502
        %v519 = vadd.f32 %v487, %v503
        %v520 = vadd.f32 %v488, %v504
        %v521 = vadd.f32 %v489, %v505
        %v522 = vadd.f32 %v490, %v506
        %v523 = vadd.f32 %v491, %v507
        %v524 = vadd.f32 %v492, %v508
        %v525 = vadd.f32 %v493, %v509
        %v526 = vadd.f32 %v494, %v510
        %v527 = vadd.f32 %v495, %v511
        %v528 = vadd.f32 %v496, %v512
        %v529 = vmul.f32 %v385, 0.436
        %v530 = vmul.f32 %v386, 0.436
        %v531 = vmul.f32 %v387, 0.436
        %v532 = vmul.f32 %v388, 0.436
        %v533 = vmul.f32 %v389, 0.436
        %v534 = vmul.f32 %v390, 0.436
        %v535 = vmul.f32 %v391, 0.436
        %v536 = vmul.f32 %v392, 0.436
        %v537 = vmul.f32 %v393, 0.436
        %v538 = vmul.f32 %v394, 0.436
        %v539 = vmul.f32 %v395, 0.436
        %v540 = vmul.f32 %v396, 0.436
        %v541 = vmul.f32 %v397, 0.436
        %v542 = vmul.f32 %v398, 0.436
        %v543 = vmul.f32 %v399, 0.436
        %v544 = vmul.f32 %v400, 0.436
        %v545 = vadd.f32 %v513, %v529
        %v546 = vadd.f32 %v514, %v530
        %v547 = vadd.f32 %v515, %v531
        %v548 = vadd.f32 %v516, %v532
        %v549 = vadd.f32 %v517, %v533
        %v550 = vadd.f32 %v518, %v534
        %v551 = vadd.f32 %v519, %v535
        %v552 = vadd.f32 %v520, %v536
        %v553 = vadd.f32 %v521, %v537
        %v554 = vadd.f32 %v522, %v538
        %v555 = vadd.f32 %v523, %v539
        %v556 = vadd.f32 %v524, %v540
        %v557 = vadd.f32 %v525, %v541
        %v558 = vadd.f32 %v526, %v542
        %v559 = vadd.f32 %v527, %v543
        %v560 = vadd.f32 %v528, %v544
        %v561 = vmul.f32 %v351, 0.615
        %v562 = vmul.f32 %v352, 0.615
        %v563 = vmul.f32 %v353, 0.615
        %v564 = vmul.f32 %v354, 0.615
        %v565 = vmul.f32 %v355, 0.615
        %v566 = vmul.f32 %v356, 0.615
        %v567 = vmul.f32 %v357, 0.615
        %v568 = vmul.f32 %v358, 0.615
        %v569 = vmul.f32 %v359, 0.615
        %v570 = vmul.f32 %v360, 0.615
        %v571 = vmul.f32 %v361, 0.615
        %v572 = vmul.f32 %v362, 0.615
        %v573 = vmul.f32 %v363, 0.615
        %v574 = vmul.f32 %v364, 0.615
        %v575 = vmul.f32 %v365, 0.615
        %v576 = vmul.f32 %v366, 0.615
        %v577 = vmul.f32 %v368, -0.51499
        %v578 = vmul.f32 %v369, -0.51499
        %v579 = vmul.f32 %v370, -0.51499
        %v580 = vmul.f32 %v371, -0.51499
        %v581 = vmul.f32 %v372, -0.51499
        %v582 = vmul.f32 %v373, -0.51499
        %v583 = vmul.f32 %v374, -0.51499
        %v584 = vmul.f32 %v375, -0.51499
        %v585 = vmul.f32 %v376, -0.51499
        %v586 = vmul.f32 %v377, -0.51499
        %v587 = vmul.f32 %v378, -0.51499
        %v588 = vmul.f32 %v379, -0.51499
        %v589 = vmul.f32 %v380, -0.51499
        %v590 = vmul.f32 %v381, -0.51499
        %v591 = vmul.f32 %v382, -0.51499
        %v592 = vmul.f32 %v383, -0.51499
        %v593 = vadd.f32 %v561, %v577
        %v594 = vadd.f32 %v562, %v578
        %v595 = vadd.f32 %v563, %v579
        %v596 = vadd.f32 %v564, %v580
        %v597 = vadd.f32 %v565, %v581
        %v598 = vadd.f32 %v566, %v582
        %v599 = vadd.f32 %v567, %v583
        %v600 = vadd.f32 %v568, %v584
        %v601 = vadd.f32 %v569, %v585
        %v602 = vadd.f32 %v570, %v586
        %v603 = vadd.f32 %v571, %v587
        %v604 = vadd.f32 %v572, %v588
        %v605 = vadd.f32 %v573, %v589
        %v606 = vadd.f32 %v574, %v590
        %v607 = vadd.f32 %v575, %v591
        %v608 = vadd.f32 %v576, %v592
        %v609 = vmul.f32 %v385, -0.10001
        %v610 = vmul.f32 %v386, -0.10001
        %v611 = vmul.f32 %v387, -0.10001
        %v612 = vmul.f32 %v388, -0.10001
        %v613 = vmul.f32 %v389, -0.10001
        %v614 = vmul.f32 %v390, -0.10001
        %v615 = vmul.f32 %v391, -0.10001
        %v616 = vmul.f32 %v392, -0.10001
        %v617 = vmul.f32 %v393, -0.10001
        %v618 = vmul.f32 %v394, -0.10001
        %v619 = vmul.f32 %v395, -0.10001
        %v620 = vmul.f32 %v396, -0.10001
        %v621 = vmul.f32 %v397, -0.10001
        %v622 = vmul.f32 %v398, -0.10001
        %v623 = vmul.f32 %v399, -0.10001
        %v624 = vmul.f32 %v400, -0.10001
        %v625 = vadd.f32 %v593, %v609
        %v626 = vadd.f32 %v594, %v610
        %v627 = vadd.f32 %v595, %v611
        %v628 = vadd.f32 %v596, %v612
        %v629 = vadd.f32 %v597, %v613
        %v630 = vadd.f32 %v598, %v614
        %v631 = vadd.f32 %v599, %v615
        %v632 = vadd.f32 %v600, %v616
        %v633 = vadd.f32 %v601, %v617
        %v634 = vadd.f32 %v602, %v618
        %v635 = vadd.f32 %v603, %v619
        %v636 = vadd.f32 %v604, %v620
        %v637 = vadd.f32 %v605, %v621
        %v638 = vadd.f32 %v606, %v622
        %v639 = vadd.f32 %v607, %v623
        %v640 = vadd.f32 %v608, %v624
        %v641 = vpack.c.bf16 %v466, %v465
        %v642 = vpack.c.bf16 %v468, %v467
        %v643 = vpack.c.bf16 %v470, %v469
        %v644 = vpack.c.bf16 %v472, %v471
        %v645 = vpack.c.bf16 %v474, %v473
        %v646 = vpack.c.bf16 %v476, %v475
        %v647 = vpack.c.bf16 %v478, %v477
        %v648 = vpack.c.bf16 %v480, %v479
        %v649 = vpack.c.bf16 %v546, %v545
        %v650 = vpack.c.bf16 %v548, %v547
        %v651 = vpack.c.bf16 %v550, %v549
        %v652 = vpack.c.bf16 %v552, %v551
        %v653 = vpack.c.bf16 %v554, %v553
        %v654 = vpack.c.bf16 %v556, %v555
        %v655 = vpack.c.bf16 %v558, %v557
        %v656 = vpack.c.bf16 %v560, %v559
        %v657 = vpack.c.bf16 %v626, %v625
        %v658 = vpack.c.bf16 %v628, %v627
        %v659 = vpack.c.bf16 %v630, %v629
        %v660 = vpack.c.bf16 %v632, %v631
        %v661 = vpack.c.bf16 %v634, %v633
        %v662 = vpack.c.bf16 %v636, %v635
        %v663 = vpack.c.bf16 %v638, %v637
        %v664 = vpack.c.bf16 %v640, %v639
        %v665 = vld [vmem:[#allocation4] sm:$0xff]
        %v666 = vld [vmem:[#allocation4 + $0x8] sm:$0xf]
        %v667 = vld [vmem:[#allocation4 + $0xc] sm:$0xff]
        %v668 = vld [vmem:[#allocation4 + $0x14] sm:$0xf]
        %v669 = vld [vmem:[#allocation4 + $0x18] sm:$0xff]
        %v670 = vld [vmem:[#allocation4 + $0x20] sm:$0xf]
        %v671 = vld [vmem:[#allocation4 + $0x24] sm:$0xff]
        %v672 = vld [vmem:[#allocation4 + $0x2c] sm:$0xf]
        %v673 = vld [vmem:[#allocation4 + $0x30] sm:$0xff]
        %v674 = vld [vmem:[#allocation4 + $0x38] sm:$0xf]
        %v675 = vld [vmem:[#allocation4 + $0x3c] sm:$0xff]
        %v676 = vld [vmem:[#allocation4 + $0x44] sm:$0xf]
        %v677 = vld [vmem:[#allocation4 + $0x48] sm:$0xff]
        %v678 = vld [vmem:[#allocation4 + $0x50] sm:$0xf]
        %v679 = vld [vmem:[#allocation4 + $0x54] sm:$0xff]
        %v680 = vld [vmem:[#allocation4 + $0x5c] sm:$0xf]
        %v681 = vld [vmem:[#allocation4 + $0x60] sm:$0xff]
        %v682 = vld [vmem:[#allocation4 + $0x68] sm:$0xf]
        %v683 = vld [vmem:[#allocation4 + $0x6c] sm:$0xff]
        %v684 = vld [vmem:[#allocation4 + $0x74] sm:$0xf]
        %v685 = vld [vmem:[#allocation4 + $0x78] sm:$0xff]
        %v686 = vld [vmem:[#allocation4 + $0x80] sm:$0xf]
        %v687 = vld [vmem:[#allocation4 + $0x84] sm:$0xff]
        %v688 = vld [vmem:[#allocation4 + $0x8c] sm:$0xf]
        %v689 = vld [vmem:[#allocation4 + $0x90] sm:$0xff]
        %v690 = vld [vmem:[#allocation4 + $0x98] sm:$0xf]
        %v691 = vld [vmem:[#allocation4 + $0x9c] sm:$0xff]
        %v692 = vld [vmem:[#allocation4 + $0xa4] sm:$0xf]
        %v693 = vld [vmem:[#allocation4 + $0xa8] sm:$0xff]
        %v694 = vld [vmem:[#allocation4 + $0xb0] sm:$0xf]
        %v695 = vld [vmem:[#allocation4 + $0xb4] sm:$0xff]
        %v696 = vld [vmem:[#allocation4 + $0xbc] sm:$0xf]
        %v697 = vld [vmem:[#allocation4 + $0xc0] sm:$0xff]
        %v698 = vld [vmem:[#allocation4 + $0xc8] sm:$0xf]
        %v699 = vld [vmem:[#allocation4 + $0xcc] sm:$0xff]
        %v700 = vld [vmem:[#allocation4 + $0xd4] sm:$0xf]
        %v701 = vld [vmem:[#allocation4 + $0xd8] sm:$0xff]
        %v702 = vld [vmem:[#allocation4 + $0xe0] sm:$0xf]
        %v703 = vld [vmem:[#allocation4 + $0xe4] sm:$0xff]
        %v704 = vld [vmem:[#allocation4 + $0xec] sm:$0xf]
        %v705 = vld [vmem:[#allocation4 + $0xf0] sm:$0xff]
        %v706 = vld [vmem:[#allocation4 + $0xf8] sm:$0xf]
        %v707 = vld [vmem:[#allocation4 + $0xfc] sm:$0xff]
        %v708 = vld [vmem:[#allocation4 + $0x104] sm:$0xf]
        %v709 = vld [vmem:[#allocation4 + $0x108] sm:$0xff]
        %v710 = vld [vmem:[#allocation4 + $0x110] sm:$0xf]
        %v711 = vld [vmem:[#allocation4 + $0x114] sm:$0xff]
        %v712 = vld [vmem:[#allocation4 + $0x11c] sm:$0xf]
        %v713 = vld [vmem:[#allocation4 + $0x120] sm:$0xff]
        %v714 = vld [vmem:[#allocation4 + $0x128] sm:$0xf]
        %v715 = vld [vmem:[#allocation4 + $0x12c] sm:$0xff]
        %v716 = vld [vmem:[#allocation4 + $0x134] sm:$0xf]
        %v717 = vld [vmem:[#allocation4 + $0x138] sm:$0xff]
        %v718 = vld [vmem:[#allocation4 + $0x140] sm:$0xf]
        %v719 = vld [vmem:[#allocation4 + $0x144] sm:$0xff]
        %v720 = vld [vmem:[#allocation4 + $0x14c] sm:$0xf]
        %v721 = vld [vmem:[#allocation4 + $0x150] sm:$0xff]
        %v722 = vld [vmem:[#allocation4 + $0x158] sm:$0xf]
        %v723 = vld [vmem:[#allocation4 + $0x15c] sm:$0xff]
        %v724 = vld [vmem:[#allocation4 + $0x164] sm:$0xf]
        %v725 = vld [vmem:[#allocation4 + $0x168] sm:$0xff]
        %v726 = vld [vmem:[#allocation4 + $0x170] sm:$0xf]
        %v727 = vld [vmem:[#allocation4 + $0x174] sm:$0xff]
        %v728 = vld [vmem:[#allocation4 + $0x17c] sm:$0xf]
        %v729 = vld [vmem:[#allocation4 + $0x180] sm:$0xff]
        %v730 = vld [vmem:[#allocation4 + $0x188] sm:$0xf]
        %v731 = vld [vmem:[#allocation4 + $0x18c] sm:$0xff]
        %v732 = vld [vmem:[#allocation4 + $0x194] sm:$0xf]
        %v733 = vld [vmem:[#allocation4 + $0x198] sm:$0xff]
        %v734 = vld [vmem:[#allocation4 + $0x1a0] sm:$0xf]
        %v735 = vld [vmem:[#allocation4 + $0x1a4] sm:$0xff]
        %v736 = vld [vmem:[#allocation4 + $0x1ac] sm:$0xf]
        %v737 = vld [vmem:[#allocation4 + $0x1b0] sm:$0xff]
        %v738 = vld [vmem:[#allocation4 + $0x1b8] sm:$0xf]
        %v739 = vld [vmem:[#allocation4 + $0x1bc] sm:$0xff]
        %v740 = vld [vmem:[#allocation4 + $0x1c4] sm:$0xf]
        %v741 = vld [vmem:[#allocation4 + $0x1c8] sm:$0xff]
        %v742 = vld [vmem:[#allocation4 + $0x1d0] sm:$0xf]
        %v743 = vld [vmem:[#allocation4 + $0x1d4] sm:$0xff]
        %v744 = vld [vmem:[#allocation4 + $0x1dc] sm:$0xf]
        %v745 = vld [vmem:[#allocation4 + $0x1e0] sm:$0xff]
        %v746 = vld [vmem:[#allocation4 + $0x1e8] sm:$0xf]
        %v747 = vld [vmem:[#allocation4 + $0x1ec] sm:$0xff]
        %v748 = vld [vmem:[#allocation4 + $0x1f4] sm:$0xf]
        %v749 = vld [vmem:[#allocation4 + $0x1f8] sm:$0xff]
        %v750 = vld [vmem:[#allocation4 + $0x200] sm:$0xf]
        %v751 = vld [vmem:[#allocation4 + $0x204] sm:$0xff]
        %v752 = vld [vmem:[#allocation4 + $0x20c] sm:$0xf]
        %v753 = vld [vmem:[#allocation4 + $0x210] sm:$0xff]
        %v754 = vld [vmem:[#allocation4 + $0x218] sm:$0xf]
        %v755 = vld [vmem:[#allocation4 + $0x21c] sm:$0xff]
        %v756 = vld [vmem:[#allocation4 + $0x224] sm:$0xf]
        %v757 = vld [vmem:[#allocation4 + $0x228] sm:$0xff]
        %v758 = vld [vmem:[#allocation4 + $0x230] sm:$0xf]
        %v759 = vld [vmem:[#allocation4 + $0x234] sm:$0xff]
        %v760 = vld [vmem:[#allocation4 + $0x23c] sm:$0xf]
        %v857 = vunpack.c.l.b16 %v665
        %v858 = vunpack.c.h.b16 %v665
        %v859 = vunpack.c.l.b16 %v666
        %v860 = vunpack.c.l.b16 %v667
        %v861 = vunpack.c.h.b16 %v667
        %v862 = vunpack.c.l.b16 %v668
        %v863 = vunpack.c.l.b16 %v669
        %v864 = vunpack.c.h.b16 %v669
        %v865 = vunpack.c.l.b16 %v670
        %v866 = vunpack.c.l.b16 %v671
        %v867 = vunpack.c.h.b16 %v671
        %v868 = vunpack.c.l.b16 %v672
        %v869 = vunpack.c.l.b16 %v673
        %v870 = vunpack.c.h.b16 %v673
        %v871 = vunpack.c.l.b16 %v674
        %v872 = vunpack.c.l.b16 %v675
        %v873 = vunpack.c.h.b16 %v675
        %v874 = vunpack.c.l.b16 %v676
        %v875 = vunpack.c.l.b16 %v677
        %v876 = vunpack.c.h.b16 %v677
        %v877 = vunpack.c.l.b16 %v678
        %v878 = vunpack.c.l.b16 %v679
        %v879 = vunpack.c.h.b16 %v679
        %v880 = vunpack.c.l.b16 %v680
        %v881 = vunpack.c.l.b16 %v681
        %v882 = vunpack.c.h.b16 %v681
        %v883 = vunpack.c.l.b16 %v682
        %v884 = vunpack.c.l.b16 %v683
        %v885 = vunpack.c.h.b16 %v683
        %v886 = vunpack.c.l.b16 %v684
        %v887 = vunpack.c.l.b16 %v685
        %v888 = vunpack.c.h.b16 %v685
        %v889 = vunpack.c.l.b16 %v686
        %v890 = vunpack.c.l.b16 %v687
        %v891 = vunpack.c.h.b16 %v687
        %v892 = vunpack.c.l.b16 %v688
        %v893 = vunpack.c.l.b16 %v689
        %v894 = vunpack.c.h.b16 %v689
        %v895 = vunpack.c.l.b16 %v690
        %v896 = vunpack.c.l.b16 %v691
        %v897 = vunpack.c.h.b16 %v691
        %v898 = vunpack.c.l.b16 %v692
        %v899 = vunpack.c.l.b16 %v693
        %v900 = vunpack.c.h.b16 %v693
        %v901 = vunpack.c.l.b16 %v694
        %v902 = vunpack.c.l.b16 %v695
        %v903 = vunpack.c.h.b16 %v695
        %v904 = vunpack.c.l.b16 %v696
        %v905 = vunpack.c.l.b16 %v697
        %v906 = vunpack.c.h.b16 %v697
        %v907 = vunpack.c.l.b16 %v698
        %v908 = vunpack.c.l.b16 %v699
        %v909 = vunpack.c.h.b16 %v699
        %v910 = vunpack.c.l.b16 %v700
        %v911 = vunpack.c.l.b16 %v701
        %v912 = vunpack.c.h.b16 %v701
        %v913 = vunpack.c.l.b16 %v702
        %v914 = vunpack.c.l.b16 %v703
        %v915 = vunpack.c.h.b16 %v703
        %v916 = vunpack.c.l.b16 %v704
        %v917 = vunpack.c.l.b16 %v705
        %v918 = vunpack.c.h.b16 %v705
        %v919 = vunpack.c.l.b16 %v706
        %v920 = vunpack.c.l.b16 %v707
        %v921 = vunpack.c.h.b16 %v707
        %v922 = vunpack.c.l.b16 %v708
        %v923 = vunpack.c.l.b16 %v709
        %v924 = vunpack.c.h.b16 %v709
        %v925 = vunpack.c.l.b16 %v710
        %v926 = vunpack.c.l.b16 %v711
        %v927 = vunpack.c.h.b16 %v711
        %v928 = vunpack.c.l.b16 %v712
        %v929 = vunpack.c.l.b16 %v713
        %v930 = vunpack.c.h.b16 %v713
        %v931 = vunpack.c.l.b16 %v714
        %v932 = vunpack.c.l.b16 %v715
        %v933 = vunpack.c.h.b16 %v715
        %v934 = vunpack.c.l.b16 %v716
        %v935 = vunpack.c.l.b16 %v717
        %v936 = vunpack.c.h.b16 %v717
        %v937 = vunpack.c.l.b16 %v718
        %v938 = vunpack.c.l.b16 %v719
        %v939 = vunpack.c.h.b16 %v719
        %v940 = vunpack.c.l.b16 %v720
        %v941 = vunpack.c.l.b16 %v721
        %v942 = vunpack.c.h.b16 %v721
        %v943 = vunpack.c.l.b16 %v722
        %v944 = vunpack.c.l.b16 %v723
        %v945 = vunpack.c.h.b16 %v723
        %v946 = vunpack.c.l.b16 %v724
        %v947 = vunpack.c.l.b16 %v725
        %v948 = vunpack.c.h.b16 %v725
        %v949 = vunpack.c.l.b16 %v726
        %v950 = vunpack.c.l.b16 %v727
        %v951 = vunpack.c.h.b16 %v727
        %v952 = vunpack.c.l.b16 %v728
        %v953 = vunpack.c.l.b16 %v729
        %v954 = vunpack.c.h.b16 %v729
        %v955 = vunpack.c.l.b16 %v730
        %v956 = vunpack.c.l.b16 %v731
        %v957 = vunpack.c.h.b16 %v731
        %v958 = vunpack.c.l.b16 %v732
        %v959 = vunpack.c.l.b16 %v733
        %v960 = vunpack.c.h.b16 %v733
        %v961 = vunpack.c.l.b16 %v734
        %v962 = vunpack.c.l.b16 %v735
        %v963 = vunpack.c.h.b16 %v735
        %v964 = vunpack.c.l.b16 %v736
        %v965 = vunpack.c.l.b16 %v737
        %v966 = vunpack.c.h.b16 %v737
        %v967 = vunpack.c.l.b16 %v738
        %v968 = vunpack.c.l.b16 %v739
        %v969 = vunpack.c.h.b16 %v739
        %v970 = vunpack.c.l.b16 %v740
        %v971 = vunpack.c.l.b16 %v741
        %v972 = vunpack.c.h.b16 %v741
        %v973 = vunpack.c.l.b16 %v742
        %v974 = vunpack.c.l.b16 %v743
        %v975 = vunpack.c.h.b16 %v743
        %v976 = vunpack.c.l.b16 %v744
        %v977 = vunpack.c.l.b16 %v745
        %v978 = vunpack.c.h.b16 %v745
        %v979 = vunpack.c.l.b16 %v746
        %v980 = vunpack.c.l.b16 %v747
        %v981 = vunpack.c.h.b16 %v747
        %v982 = vunpack.c.l.b16 %v748
        %v983 = vunpack.c.l.b16 %v749
        %v984 = vunpack.c.h.b16 %v749
        %v985 = vunpack.c.l.b16 %v750
        %v986 = vunpack.c.l.b16 %v751
        %v987 = vunpack.c.h.b16 %v751
        %v988 = vunpack.c.l.b16 %v752
        %v989 = vunpack.c.l.b16 %v753
        %v990 = vunpack.c.h.b16 %v753
        %v991 = vunpack.c.l.b16 %v754
        %v992 = vunpack.c.l.b16 %v755
        %v993 = vunpack.c.h.b16 %v755
        %v994 = vunpack.c.l.b16 %v756
        %v995 = vunpack.c.l.b16 %v757
        %v996 = vunpack.c.h.b16 %v757
        %v997 = vunpack.c.l.b16 %v758
        %v998 = vunpack.c.l.b16 %v759
        %v999 = vunpack.c.h.b16 %v759
        %v1000 = vunpack.c.l.b16 %v760
        %v1001 = vpack.c.b16 %v860, %v857
        %v1002 = vpack.c.b16 %v861, %v858
        %v1003 = vpack.c.b16 %v862, %v859
        %v1004 = vpack.c.b16 %v866, %v863
        %v1005 = vpack.c.b16 %v867, %v864
        %v1006 = vpack.c.b16 %v868, %v865
        %v1007 = vpack.c.b16 %v872, %v869
        %v1008 = vpack.c.b16 %v873, %v870
        %v1009 = vpack.c.b16 %v874, %v871
        %v1010 = vpack.c.b16 %v878, %v875
        %v1011 = vpack.c.b16 %v879, %v876
        %v1012 = vpack.c.b16 %v880, %v877
        %v1013 = vpack.c.b16 %v884, %v881
        %v1014 = vpack.c.b16 %v885, %v882
        %v1015 = vpack.c.b16 %v886, %v883
        %v1016 = vpack.c.b16 %v890, %v887
        %v1017 = vpack.c.b16 %v891, %v888
        %v1018 = vpack.c.b16 %v892, %v889
        %v1019 = vpack.c.b16 %v896, %v893
        %v1020 = vpack.c.b16 %v897, %v894
        %v1021 = vpack.c.b16 %v898, %v895
        %v1022 = vpack.c.b16 %v902, %v899
        %v1023 = vpack.c.b16 %v903, %v900
        %v1024 = vpack.c.b16 %v904, %v901
        %v1025 = vpack.c.b16 %v908, %v905
        %v1026 = vpack.c.b16 %v909, %v906
        %v1027 = vpack.c.b16 %v910, %v907
        %v1028 = vpack.c.b16 %v914, %v911
        %v1029 = vpack.c.b16 %v915, %v912
        %v1030 = vpack.c.b16 %v916, %v913
        %v1031 = vpack.c.b16 %v920, %v917
        %v1032 = vpack.c.b16 %v921, %v918
        %v1033 = vpack.c.b16 %v922, %v919
        %v1034 = vpack.c.b16 %v926, %v923
        %v1035 = vpack.c.b16 %v927, %v924
        %v1036 = vpack.c.b16 %v928, %v925
        %v1037 = vpack.c.b16 %v932, %v929
        %v1038 = vpack.c.b16 %v933, %v930
        %v1039 = vpack.c.b16 %v934, %v931
        %v1040 = vpack.c.b16 %v938, %v935
        %v1041 = vpack.c.b16 %v939, %v936
        %v1042 = vpack.c.b16 %v940, %v937
        %v1043 = vpack.c.b16 %v944, %v941
        %v1044 = vpack.c.b16 %v945, %v942
        %v1045 = vpack.c.b16 %v946, %v943
        %v1046 = vpack.c.b16 %v950, %v947
        %v1047 = vpack.c.b16 %v951, %v948
        %v1048 = vpack.c.b16 %v952, %v949
        %v1049 = vpack.c.b16 %v956, %v953
        %v1050 = vpack.c.b16 %v957, %v954
        %v1051 = vpack.c.b16 %v958, %v955
        %v1052 = vpack.c.b16 %v962, %v959
        %v1053 = vpack.c.b16 %v963, %v960
        %v1054 = vpack.c.b16 %v964, %v961
        %v1055 = vpack.c.b16 %v968, %v965
        %v1056 = vpack.c.b16 %v969, %v966
        %v1057 = vpack.c.b16 %v970, %v967
        %v1058 = vpack.c.b16 %v974, %v971
        %v1059 = vpack.c.b16 %v975, %v972
        %v1060 = vpack.c.b16 %v976, %v973
        %v1061 = vpack.c.b16 %v980, %v977
        %v1062 = vpack.c.b16 %v981, %v978
        %v1063 = vpack.c.b16 %v982, %v979
        %v1064 = vpack.c.b16 %v986, %v983
        %v1065 = vpack.c.b16 %v987, %v984
        %v1066 = vpack.c.b16 %v988, %v985
        %v1067 = vpack.c.b16 %v992, %v989
        %v1068 = vpack.c.b16 %v993, %v990
        %v1069 = vpack.c.b16 %v994, %v991
        %v1070 = vpack.c.b16 %v998, %v995
        %v1071 = vpack.c.b16 %v999, %v996
        %v1072 = vpack.c.b16 %v1000, %v997
        %1145 = vmatpush.bf16.msra.mxu0 %v648
        %1146 = vmatpush.bf16.msra.mxu0 %v647
        %1147 = vmatpush.bf16.msra.mxu0 %v646
        %1148 = vmatpush.bf16.msra.mxu0 %v645
        %1149 = vmatpush.bf16.msra.mxu0 %v644
        %1150 = vmatpush.bf16.msra.mxu0 %v643
        %1151 = vmatpush.bf16.msra.mxu0 %v642
        %1152 = vmatpush.bf16.msra.mxu0 %v641
        %1153 = vmatmul.bf16.gmra.mxu0 %v1001
        %v1154 = vpop.f32.mrf.mxu0
        %v1155 = vadd.f32 0.0, %v1154
        %v1156 = vpop.f32.mrf.mxu0
        %v1157 = vadd.f32 0.0, %v1156
        %1158 = vmatmul.bf16.gmra.mxu0 %v1004
        %v1159 = vpop.f32.mrf.mxu0
        %v1160 = vadd.f32 0.0, %v1159
        %v1161 = vpop.f32.mrf.mxu0
        %v1162 = vadd.f32 0.0, %v1161
        %1163 = vmatmul.bf16.gmra.mxu0 %v1007
        %v1164 = vpop.f32.mrf.mxu0
        %v1165 = vadd.f32 0.0, %v1164
        %v1166 = vpop.f32.mrf.mxu0
        %v1167 = vadd.f32 0.0, %v1166
        %1168 = vmatmul.bf16.gmra.mxu0 %v1010
        %v1169 = vpop.f32.mrf.mxu0
        %v1170 = vadd.f32 0.0, %v1169
        %v1171 = vpop.f32.mrf.mxu0
        %v1172 = vadd.f32 0.0, %v1171
        %1173 = vmatmul.bf16.gmra.mxu0 %v1013
        %v1174 = vpop.f32.mrf.mxu0
        %v1175 = vadd.f32 0.0, %v1174
        %v1176 = vpop.f32.mrf.mxu0
        %v1177 = vadd.f32 0.0, %v1176
        %1178 = vmatmul.bf16.gmra.mxu0 %v1016
        %v1179 = vpop.f32.mrf.mxu0
        %v1180 = vadd.f32 0.0, %v1179
        %v1181 = vpop.f32.mrf.mxu0
        %v1182 = vadd.f32 0.0, %v1181
        %1183 = vmatmul.bf16.gmra.mxu0 %v1019
        %v1184 = vpop.f32.mrf.mxu0
        %v1185 = vadd.f32 0.0, %v1184
        %v1186 = vpop.f32.mrf.mxu0
        %v1187 = vadd.f32 0.0, %v1186
        %1188 = vmatmul.bf16.gmra.mxu0 %v1022
        %v1189 = vpop.f32.mrf.mxu0
        %v1190 = vadd.f32 0.0, %v1189
        %v1191 = vpop.f32.mrf.mxu0
        %v1192 = vadd.f32 0.0, %v1191
        %1193 = vmatmul.bf16.gmra.mxu0 %v1025
        %v1194 = vpop.f32.mrf.mxu0
        %v1195 = vadd.f32 0.0, %v1194
        %v1196 = vpop.f32.mrf.mxu0
        %v1197 = vadd.f32 0.0, %v1196
        %1198 = vmatmul.bf16.gmra.mxu0 %v1028
        %v1199 = vpop.f32.mrf.mxu0
        %v1200 = vadd.f32 0.0, %v1199
        %v1201 = vpop.f32.mrf.mxu0
        %v1202 = vadd.f32 0.0, %v1201
        %1203 = vmatmul.bf16.gmra.mxu0 %v1031
        %v1204 = vpop.f32.mrf.mxu0
        %v1205 = vadd.f32 0.0, %v1204
        %v1206 = vpop.f32.mrf.mxu0
        %v1207 = vadd.f32 0.0, %v1206
        %1208 = vmatmul.bf16.gmra.mxu0 %v1034
        %v1209 = vpop.f32.mrf.mxu0
        %v1210 = vadd.f32 0.0, %v1209
        %v1211 = vpop.f32.mrf.mxu0
        %v1212 = vadd.f32 0.0, %v1211
        %1213 = vmatmul.bf16.gmra.mxu0 %v1037
        %v1214 = vpop.f32.mrf.mxu0
        %v1215 = vadd.f32 0.0, %v1214
        %v1216 = vpop.f32.mrf.mxu0
        %v1217 = vadd.f32 0.0, %v1216
        %1218 = vmatmul.bf16.gmra.mxu0 %v1040
        %v1219 = vpop.f32.mrf.mxu0
        %v1220 = vadd.f32 0.0, %v1219
        %v1221 = vpop.f32.mrf.mxu0
        %v1222 = vadd.f32 0.0, %v1221
        %1223 = vmatmul.bf16.gmra.mxu0 %v1043
        %v1224 = vpop.f32.mrf.mxu0
        %v1225 = vadd.f32 0.0, %v1224
        %v1226 = vpop.f32.mrf.mxu0
        %v1227 = vadd.f32 0.0, %v1226
        %1228 = vmatmul.bf16.gmra.mxu0 %v1046
        %v1229 = vpop.f32.mrf.mxu0
        %v1230 = vadd.f32 0.0, %v1229
        %v1231 = vpop.f32.mrf.mxu0
        %v1232 = vadd.f32 0.0, %v1231
        %1233 = vmatmul.bf16.gmra.mxu0 %v1049
        %v1234 = vpop.f32.mrf.mxu0
        %v1235 = vadd.f32 0.0, %v1234
        %v1236 = vpop.f32.mrf.mxu0
        %v1237 = vadd.f32 0.0, %v1236
        %1238 = vmatmul.bf16.gmra.mxu0 %v1052
        %v1239 = vpop.f32.mrf.mxu0
        %v1240 = vadd.f32 0.0, %v1239
        %v1241 = vpop.f32.mrf.mxu0
        %v1242 = vadd.f32 0.0, %v1241
        %1243 = vmatmul.bf16.gmra.mxu0 %v1055
        %v1244 = vpop.f32.mrf.mxu0
        %v1245 = vadd.f32 0.0, %v1244
        %v1246 = vpop.f32.mrf.mxu0
        %v1247 = vadd.f32 0.0, %v1246
        %1248 = vmatmul.bf16.gmra.mxu0 %v1058
        %v1249 = vpop.f32.mrf.mxu0
        %v1250 = vadd.f32 0.0, %v1249
        %v1251 = vpop.f32.mrf.mxu0
        %v1252 = vadd.f32 0.0, %v1251
        %1253 = vmatmul.bf16.gmra.mxu0 %v1061
        %v1254 = vpop.f32.mrf.mxu0
        %v1255 = vadd.f32 0.0, %v1254
        %v1256 = vpop.f32.mrf.mxu0
        %v1257 = vadd.f32 0.0, %v1256
        %1258 = vmatmul.bf16.gmra.mxu0 %v1064
        %v1259 = vpop.f32.mrf.mxu0
        %v1260 = vadd.f32 0.0, %v1259
        %v1261 = vpop.f32.mrf.mxu0
        %v1262 = vadd.f32 0.0, %v1261
        %1263 = vmatmul.bf16.gmra.mxu0 %v1067
        %v1264 = vpop.f32.mrf.mxu0
        %v1265 = vadd.f32 0.0, %v1264
        %v1266 = vpop.f32.mrf.mxu0
        %v1267 = vadd.f32 0.0, %v1266
        %1268 = vmatmul.bf16.gmra.mxu0 %v1070
        %v1269 = vpop.f32.mrf.mxu0
        %v1270 = vadd.f32 0.0, %v1269
        %v1271 = vpop.f32.mrf.mxu0
        %v1272 = vadd.f32 0.0, %v1271
        %1273 = vdwg.mxu0
        %1274 = vmatpush.bf16.msra.mxu0 %v656
        %1275 = vmatpush.bf16.msra.mxu0 %v655
        %1276 = vmatpush.bf16.msra.mxu0 %v654
        %1277 = vmatpush.bf16.msra.mxu0 %v653
        %1278 = vmatpush.bf16.msra.mxu0 %v652
        %1279 = vmatpush.bf16.msra.mxu0 %v651
        %1280 = vmatpush.bf16.msra.mxu0 %v650
        %1281 = vmatpush.bf16.msra.mxu0 %v649
        %1282 = vmatmul.bf16.gmra.mxu0 %v1002
        %v1283 = vpop.f32.mrf.mxu0
        %v1284 = vadd.f32 %v1155, %v1283
        %v1285 = vpop.f32.mrf.mxu0
        %v1286 = vadd.f32 %v1157, %v1285
        %1287 = vmatmul.bf16.gmra.mxu0 %v1005
        %v1288 = vpop.f32.mrf.mxu0
        %v1289 = vadd.f32 %v1160, %v1288
        %v1290 = vpop.f32.mrf.mxu0
        %v1291 = vadd.f32 %v1162, %v1290
        %1292 = vmatmul.bf16.gmra.mxu0 %v1008
        %v1293 = vpop.f32.mrf.mxu0
        %v1294 = vadd.f32 %v1165, %v1293
        %v1295 = vpop.f32.mrf.mxu0
        %v1296 = vadd.f32 %v1167, %v1295
        %1297 = vmatmul.bf16.gmra.mxu0 %v1011
        %v1298 = vpop.f32.mrf.mxu0
        %v1299 = vadd.f32 %v1170, %v1298
        %v1300 = vpop.f32.mrf.mxu0
        %v1301 = vadd.f32 %v1172, %v1300
        %1302 = vmatmul.bf16.gmra.mxu0 %v1014
        %v1303 = vpop.f32.mrf.mxu0
        %v1304 = vadd.f32 %v1175, %v1303
        %v1305 = vpop.f32.mrf.mxu0
        %v1306 = vadd.f32 %v1177, %v1305
        %1307 = vmatmul.bf16.gmra.mxu0 %v1017
        %v1308 = vpop.f32.mrf.mxu0
        %v1309 = vadd.f32 %v1180, %v1308
        %v1310 = vpop.f32.mrf.mxu0
        %v1311 = vadd.f32 %v1182, %v1310
        %1312 = vmatmul.bf16.gmra.mxu0 %v1020
        %v1313 = vpop.f32.mrf.mxu0
        %v1314 = vadd.f32 %v1185, %v1313
        %v1315 = vpop.f32.mrf.mxu0
        %v1316 = vadd.f32 %v1187, %v1315
        %1317 = vmatmul.bf16.gmra.mxu0 %v1023
        %v1318 = vpop.f32.mrf.mxu0
        %v1319 = vadd.f32 %v1190, %v1318
        %v1320 = vpop.f32.mrf.mxu0
        %v1321 = vadd.f32 %v1192, %v1320
        %1322 = vmatmul.bf16.gmra.mxu0 %v1026
        %v1323 = vpop.f32.mrf.mxu0
        %v1324 = vadd.f32 %v1195, %v1323
        %v1325 = vpop.f32.mrf.mxu0
        %v1326 = vadd.f32 %v1197, %v1325
        %1327 = vmatmul.bf16.gmra.mxu0 %v1029
        %v1328 = vpop.f32.mrf.mxu0
        %v1329 = vadd.f32 %v1200, %v1328
        %v1330 = vpop.f32.mrf.mxu0
        %v1331 = vadd.f32 %v1202, %v1330
        %1332 = vmatmul.bf16.gmra.mxu0 %v1032
        %v1333 = vpop.f32.mrf.mxu0
        %v1334 = vadd.f32 %v1205, %v1333
        %v1335 = vpop.f32.mrf.mxu0
        %v1336 = vadd.f32 %v1207, %v1335
        %1337 = vmatmul.bf16.gmra.mxu0 %v1035
        %v1338 = vpop.f32.mrf.mxu0
        %v1339 = vadd.f32 %v1210, %v1338
        %v1340 = vpop.f32.mrf.mxu0
        %v1341 = vadd.f32 %v1212, %v1340
        %1342 = vmatmul.bf16.gmra.mxu0 %v1038
        %v1343 = vpop.f32.mrf.mxu0
        %v1344 = vadd.f32 %v1215, %v1343
        %v1345 = vpop.f32.mrf.mxu0
        %v1346 = vadd.f32 %v1217, %v1345
        %1347 = vmatmul.bf16.gmra.mxu0 %v1041
        %v1348 = vpop.f32.mrf.mxu0
        %v1349 = vadd.f32 %v1220, %v1348
        %v1350 = vpop.f32.mrf.mxu0
        %v1351 = vadd.f32 %v1222, %v1350
        %1352 = vmatmul.bf16.gmra.mxu0 %v1044
        %v1353 = vpop.f32.mrf.mxu0
        %v1354 = vadd.f32 %v1225, %v1353
        %v1355 = vpop.f32.mrf.mxu0
        %v1356 = vadd.f32 %v1227, %v1355
        %1357 = vmatmul.bf16.gmra.mxu0 %v1047
        %v1358 = vpop.f32.mrf.mxu0
        %v1359 = vadd.f32 %v1230, %v1358
        %v1360 = vpop.f32.mrf.mxu0
        %v1361 = vadd.f32 %v1232, %v1360
        %1362 = vmatmul.bf16.gmra.mxu0 %v1050
        %v1363 = vpop.f32.mrf.mxu0
        %v1364 = vadd.f32 %v1235, %v1363
        %v1365 = vpop.f32.mrf.mxu0
        %v1366 = vadd.f32 %v1237, %v1365
        %1367 = vmatmul.bf16.gmra.mxu0 %v1053
        %v1368 = vpop.f32.mrf.mxu0
        %v1369 = vadd.f32 %v1240, %v1368
        %v1370 = vpop.f32.mrf.mxu0
        %v1371 = vadd.f32 %v1242, %v1370
        %1372 = vmatmul.bf16.gmra.mxu0 %v1056
        %v1373 = vpop.f32.mrf.mxu0
        %v1374 = vadd.f32 %v1245, %v1373
        %v1375 = vpop.f32.mrf.mxu0
        %v1376 = vadd.f32 %v1247, %v1375
        %1377 = vmatmul.bf16.gmra.mxu0 %v1059
        %v1378 = vpop.f32.mrf.mxu0
        %v1379 = vadd.f32 %v1250, %v1378
        %v1380 = vpop.f32.mrf.mxu0
        %v1381 = vadd.f32 %v1252, %v1380
        %1382 = vmatmul.bf16.gmra.mxu0 %v1062
        %v1383 = vpop.f32.mrf.mxu0
        %v1384 = vadd.f32 %v1255, %v1383
        %v1385 = vpop.f32.mrf.mxu0
        %v1386 = vadd.f32 %v1257, %v1385
        %1387 = vmatmul.bf16.gmra.mxu0 %v1065
        %v1388 = vpop.f32.mrf.mxu0
        %v1389 = vadd.f32 %v1260, %v1388
        %v1390 = vpop.f32.mrf.mxu0
        %v1391 = vadd.f32 %v1262, %v1390
        %1392 = vmatmul.bf16.gmra.mxu0 %v1068
        %v1393 = vpop.f32.mrf.mxu0
        %v1394 = vadd.f32 %v1265, %v1393
        %v1395 = vpop.f32.mrf.mxu0
        %v1396 = vadd.f32 %v1267, %v1395
        %1397 = vmatmul.bf16.gmra.mxu0 %v1071
        %v1398 = vpop.f32.mrf.mxu0
        %v1399 = vadd.f32 %v1270, %v1398
        %v1400 = vpop.f32.mrf.mxu0
        %v1401 = vadd.f32 %v1272, %v1400
        %1402 = vdwg.mxu0
        %1403 = vmatpush.bf16.msra.mxu0 %v664
        %1404 = vmatpush.bf16.msra.mxu0 %v663
        %1405 = vmatpush.bf16.msra.mxu0 %v662
        %1406 = vmatpush.bf16.msra.mxu0 %v661
        %1407 = vmatpush.bf16.msra.mxu0 %v660
        %1408 = vmatpush.bf16.msra.mxu0 %v659
        %1409 = vmatpush.bf16.msra.mxu0 %v658
        %1410 = vmatpush.bf16.msra.mxu0 %v657
        %1411 = vmatmul.bf16.gmra.mxu0 %v1003
        %v1412 = vpop.f32.mrf.mxu0
        %v1413 = vadd.f32 %v1284, %v1412
        %v1414 = vpop.f32.mrf.mxu0
        %v1415 = vadd.f32 %v1286, %v1414
        %1416 = vmatmul.bf16.gmra.mxu0 %v1006
        %v1417 = vpop.f32.mrf.mxu0
        %v1418 = vadd.f32 %v1289, %v1417
        %v1419 = vpop.f32.mrf.mxu0
        %v1420 = vadd.f32 %v1291, %v1419
        %1421 = vmatmul.bf16.gmra.mxu0 %v1009
        %v1422 = vpop.f32.mrf.mxu0
        %v1423 = vadd.f32 %v1294, %v1422
        %v1424 = vpop.f32.mrf.mxu0
        %v1425 = vadd.f32 %v1296, %v1424
        %1426 = vmatmul.bf16.gmra.mxu0 %v1012
        %v1427 = vpop.f32.mrf.mxu0
        %v1428 = vadd.f32 %v1299, %v1427
        %v1429 = vpop.f32.mrf.mxu0
        %v1430 = vadd.f32 %v1301, %v1429
        %1431 = vmatmul.bf16.gmra.mxu0 %v1015
        %v1432 = vpop.f32.mrf.mxu0
        %v1433 = vadd.f32 %v1304, %v1432
        %v1434 = vpop.f32.mrf.mxu0
        %v1435 = vadd.f32 %v1306, %v1434
        %1436 = vmatmul.bf16.gmra.mxu0 %v1018
        %v1437 = vpop.f32.mrf.mxu0
        %v1438 = vadd.f32 %v1309, %v1437
        %v1439 = vpop.f32.mrf.mxu0
        %v1440 = vadd.f32 %v1311, %v1439
        %1441 = vmatmul.bf16.gmra.mxu0 %v1021
        %v1442 = vpop.f32.mrf.mxu0
        %v1443 = vadd.f32 %v1314, %v1442
        %v1444 = vpop.f32.mrf.mxu0
        %v1445 = vadd.f32 %v1316, %v1444
        %1446 = vmatmul.bf16.gmra.mxu0 %v1024
        %v1447 = vpop.f32.mrf.mxu0
        %v1448 = vadd.f32 %v1319, %v1447
        %v1449 = vpop.f32.mrf.mxu0
        %v1450 = vadd.f32 %v1321, %v1449
        %1451 = vmatmul.bf16.gmra.mxu0 %v1027
        %v1452 = vpop.f32.mrf.mxu0
        %v1453 = vadd.f32 %v1324, %v1452
        %v1454 = vpop.f32.mrf.mxu0
        %v1455 = vadd.f32 %v1326, %v1454
        %1456 = vmatmul.bf16.gmra.mxu0 %v1030
        %v1457 = vpop.f32.mrf.mxu0
        %v1458 = vadd.f32 %v1329, %v1457
        %v1459 = vpop.f32.mrf.mxu0
        %v1460 = vadd.f32 %v1331, %v1459
        %1461 = vmatmul.bf16.gmra.mxu0 %v1033
        %v1462 = vpop.f32.mrf.mxu0
        %v1463 = vadd.f32 %v1334, %v1462
        %v1464 = vpop.f32.mrf.mxu0
        %v1465 = vadd.f32 %v1336, %v1464
        %1466 = vmatmul.bf16.gmra.mxu0 %v1036
        %v1467 = vpop.f32.mrf.mxu0
        %v1468 = vadd.f32 %v1339, %v1467
        %v1469 = vpop.f32.mrf.mxu0
        %v1470 = vadd.f32 %v1341, %v1469
        %1471 = vmatmul.bf16.gmra.mxu0 %v1039
        %v1472 = vpop.f32.mrf.mxu0
        %v1473 = vadd.f32 %v1344, %v1472
        %v1474 = vpop.f32.mrf.mxu0
        %v1475 = vadd.f32 %v1346, %v1474
        %1476 = vmatmul.bf16.gmra.mxu0 %v1042
        %v1477 = vpop.f32.mrf.mxu0
        %v1478 = vadd.f32 %v1349, %v1477
        %v1479 = vpop.f32.mrf.mxu0
        %v1480 = vadd.f32 %v1351, %v1479
        %1481 = vmatmul.bf16.gmra.mxu0 %v1045
        %v1482 = vpop.f32.mrf.mxu0
        %v1483 = vadd.f32 %v1354, %v1482
        %v1484 = vpop.f32.mrf.mxu0
        %v1485 = vadd.f32 %v1356, %v1484
        %1486 = vmatmul.bf16.gmra.mxu0 %v1048
        %v1487 = vpop.f32.mrf.mxu0
        %v1488 = vadd.f32 %v1359, %v1487
        %v1489 = vpop.f32.mrf.mxu0
        %v1490 = vadd.f32 %v1361, %v1489
        %1491 = vmatmul.bf16.gmra.mxu0 %v1051
        %v1492 = vpop.f32.mrf.mxu0
        %v1493 = vadd.f32 %v1364, %v1492
        %v1494 = vpop.f32.mrf.mxu0
        %v1495 = vadd.f32 %v1366, %v1494
        %1496 = vmatmul.bf16.gmra.mxu0 %v1054
        %v1497 = vpop.f32.mrf.mxu0
        %v1498 = vadd.f32 %v1369, %v1497
        %v1499 = vpop.f32.mrf.mxu0
        %v1500 = vadd.f32 %v1371, %v1499
        %1501 = vmatmul.bf16.gmra.mxu0 %v1057
        %v1502 = vpop.f32.mrf.mxu0
        %v1503 = vadd.f32 %v1374, %v1502
        %v1504 = vpop.f32.mrf.mxu0
        %v1505 = vadd.f32 %v1376, %v1504
        %1506 = vmatmul.bf16.gmra.mxu0 %v1060
        %v1507 = vpop.f32.mrf.mxu0
        %v1508 = vadd.f32 %v1379, %v1507
        %v1509 = vpop.f32.mrf.mxu0
        %v1510 = vadd.f32 %v1381, %v1509
        %1511 = vmatmul.bf16.gmra.mxu0 %v1063
        %v1512 = vpop.f32.mrf.mxu0
        %v1513 = vadd.f32 %v1384, %v1512
        %v1514 = vpop.f32.mrf.mxu0
        %v1515 = vadd.f32 %v1386, %v1514
        %1516 = vmatmul.bf16.gmra.mxu0 %v1066
        %v1517 = vpop.f32.mrf.mxu0
        %v1518 = vadd.f32 %v1389, %v1517
        %v1519 = vpop.f32.mrf.mxu0
        %v1520 = vadd.f32 %v1391, %v1519
        %1521 = vmatmul.bf16.gmra.mxu0 %v1069
        %v1522 = vpop.f32.mrf.mxu0
        %v1523 = vadd.f32 %v1394, %v1522
        %v1524 = vpop.f32.mrf.mxu0
        %v1525 = vadd.f32 %v1396, %v1524
        %1526 = vmatmul.bf16.gmra.mxu0 %v1072
        %v1527 = vpop.f32.mrf.mxu0
        %v1528 = vadd.f32 %v1399, %v1527
        %v1529 = vpop.f32.mrf.mxu0
        %v1530 = vadd.f32 %v1401, %v1529
        %1531 = vdwg.mxu0
        %v1532 = vpack.c.bf16 %v1415, %v1413
        %v1533 = vpack.c.bf16 %v1420, %v1418
        %v1534 = vpack.c.bf16 %v1425, %v1423
        %v1535 = vpack.c.bf16 %v1430, %v1428
        %v1536 = vpack.c.bf16 %v1435, %v1433
        %v1537 = vpack.c.bf16 %v1440, %v1438
        %v1538 = vpack.c.bf16 %v1445, %v1443
        %v1539 = vpack.c.bf16 %v1450, %v1448
        %v1540 = vpack.c.bf16 %v1455, %v1453
        %v1541 = vpack.c.bf16 %v1460, %v1458
        %v1542 = vpack.c.bf16 %v1465, %v1463
        %v1543 = vpack.c.bf16 %v1470, %v1468
        %v1544 = vpack.c.bf16 %v1475, %v1473
        %v1545 = vpack.c.bf16 %v1480, %v1478
        %v1546 = vpack.c.bf16 %v1485, %v1483
        %v1547 = vpack.c.bf16 %v1490, %v1488
        %v1548 = vpack.c.bf16 %v1495, %v1493
        %v1549 = vpack.c.bf16 %v1500, %v1498
        %v1550 = vpack.c.bf16 %v1505, %v1503
        %v1551 = vpack.c.bf16 %v1510, %v1508
        %v1552 = vpack.c.bf16 %v1515, %v1513
        %v1553 = vpack.c.bf16 %v1520, %v1518
        %v1554 = vpack.c.bf16 %v1525, %v1523
        %v1555 = vpack.c.bf16 %v1530, %v1528
        %v1556 = vld [vmem:[%s3] sm:$0xf]
        %v1557 = vld [vmem:[%s3 + $0x4] sm:$0xf]
        %v1558 = vld [vmem:[%s3 + $0x8] sm:$0xf]
        %v1559 = vld [vmem:[%s3 + $0xc] sm:$0xf]
        %v1560 = vld [vmem:[%s3 + $0x10] sm:$0xf]
        %v1561 = vld [vmem:[%s3 + $0x14] sm:$0xf]
        %v1562 = vld [vmem:[%s3 + $0x18] sm:$0xf]
        %v1563 = vld [vmem:[%s3 + $0x1c] sm:$0xf]
        %v1564 = vld [vmem:[%s3 + $0x20] sm:$0xf]
        %v1565 = vld [vmem:[%s3 + $0x24] sm:$0xf]
        %v1566 = vld [vmem:[%s3 + $0x28] sm:$0xf]
        %v1567 = vld [vmem:[%s3 + $0x2c] sm:$0xf]
        %v1568 = vld [vmem:[%s3 + $0x30] sm:$0xf]
        %v1569 = vld [vmem:[%s3 + $0x34] sm:$0xf]
        %v1570 = vld [vmem:[%s3 + $0x38] sm:$0xf]
        %v1571 = vld [vmem:[%s3 + $0x3c] sm:$0xf]
        %v1588 = vunpack.c.l.b16 %v1556
        %v1589 = vunpack.c.l.b16 %v1557
        %v1590 = vunpack.c.l.b16 %v1558
        %v1591 = vunpack.c.l.b16 %v1559
        %v1592 = vunpack.c.l.b16 %v1560
        %v1593 = vunpack.c.l.b16 %v1561
        %v1594 = vunpack.c.l.b16 %v1562
        %v1595 = vunpack.c.l.b16 %v1563
        %v1596 = vunpack.c.l.b16 %v1564
        %v1597 = vunpack.c.l.b16 %v1565
        %v1598 = vunpack.c.l.b16 %v1566
        %v1599 = vunpack.c.l.b16 %v1567
        %v1600 = vunpack.c.l.b16 %v1568
        %v1601 = vunpack.c.l.b16 %v1569
        %v1602 = vunpack.c.l.b16 %v1570
        %v1603 = vunpack.c.l.b16 %v1571
        %v1604 = vpack.c.b16 %v1589, %v1588
        %v1605 = vpack.c.b16 %v1591, %v1590
        %v1606 = vpack.c.b16 %v1593, %v1592
        %v1607 = vpack.c.b16 %v1595, %v1594
        %v1608 = vpack.c.b16 %v1597, %v1596
        %v1609 = vpack.c.b16 %v1599, %v1598
        %v1610 = vpack.c.b16 %v1601, %v1600
        %v1611 = vpack.c.b16 %v1603, %v1602
        %1620 = vmatpush.bf16.msra.mxu0 %v1611
        %1621 = vmatpush.bf16.msra.mxu0 %v1610
        %1622 = vmatpush.bf16.msra.mxu0 %v1609
        %1623 = vmatpush.bf16.msra.mxu0 %v1608
        %1624 = vmatpush.bf16.msra.mxu0 %v1607
        %1625 = vmatpush.bf16.msra.mxu0 %v1606
        %1626 = vmatpush.bf16.msra.mxu0 %v1605
        %1627 = vmatpush.bf16.msra.mxu0 %v1604
        %1628 = vmatmul.bf16.gmra.mxu0 %v1532
        %v1629 = vpop.f32.mrf.mxu0
        %v1630 = vadd.f32 0.0, %v1629
        %v1631 = vpop.f32.mrf.mxu0
        %v1632 = vadd.f32 0.0, %v1631
        %1633 = vmatmul.bf16.gmra.mxu0 %v1533
        %v1634 = vpop.f32.mrf.mxu0
        %v1635 = vadd.f32 0.0, %v1634
        %v1636 = vpop.f32.mrf.mxu0
        %v1637 = vadd.f32 0.0, %v1636
        %1638 = vmatmul.bf16.gmra.mxu0 %v1534
        %v1639 = vpop.f32.mrf.mxu0
        %v1640 = vadd.f32 0.0, %v1639
        %v1641 = vpop.f32.mrf.mxu0
        %v1642 = vadd.f32 0.0, %v1641
        %1643 = vmatmul.bf16.gmra.mxu0 %v1535
        %v1644 = vpop.f32.mrf.mxu0
        %v1645 = vadd.f32 0.0, %v1644
        %v1646 = vpop.f32.mrf.mxu0
        %v1647 = vadd.f32 0.0, %v1646
        %1648 = vmatmul.bf16.gmra.mxu0 %v1536
        %v1649 = vpop.f32.mrf.mxu0
        %v1650 = vadd.f32 0.0, %v1649
        %v1651 = vpop.f32.mrf.mxu0
        %v1652 = vadd.f32 0.0, %v1651
        %1653 = vmatmul.bf16.gmra.mxu0 %v1537
        %v1654 = vpop.f32.mrf.mxu0
        %v1655 = vadd.f32 0.0, %v1654
        %v1656 = vpop.f32.mrf.mxu0
        %v1657 = vadd.f32 0.0, %v1656
        %1658 = vmatmul.bf16.gmra.mxu0 %v1538
        %v1659 = vpop.f32.mrf.mxu0
        %v1660 = vadd.f32 0.0, %v1659
        %v1661 = vpop.f32.mrf.mxu0
        %v1662 = vadd.f32 0.0, %v1661
        %1663 = vmatmul.bf16.gmra.mxu0 %v1539
        %v1664 = vpop.f32.mrf.mxu0
        %v1665 = vadd.f32 0.0, %v1664
        %v1666 = vpop.f32.mrf.mxu0
        %v1667 = vadd.f32 0.0, %v1666
        %1668 = vmatmul.bf16.gmra.mxu0 %v1540
        %v1669 = vpop.f32.mrf.mxu0
        %v1670 = vadd.f32 0.0, %v1669
        %v1671 = vpop.f32.mrf.mxu0
        %v1672 = vadd.f32 0.0, %v1671
        %1673 = vmatmul.bf16.gmra.mxu0 %v1541
        %v1674 = vpop.f32.mrf.mxu0
        %v1675 = vadd.f32 0.0, %v1674
        %v1676 = vpop.f32.mrf.mxu0
        %v1677 = vadd.f32 0.0, %v1676
        %1678 = vmatmul.bf16.gmra.mxu0 %v1542
        %v1679 = vpop.f32.mrf.mxu0
        %v1680 = vadd.f32 0.0, %v1679
        %v1681 = vpop.f32.mrf.mxu0
        %v1682 = vadd.f32 0.0, %v1681
        %1683 = vmatmul.bf16.gmra.mxu0 %v1543
        %v1684 = vpop.f32.mrf.mxu0
        %v1685 = vadd.f32 0.0, %v1684
        %v1686 = vpop.f32.mrf.mxu0
        %v1687 = vadd.f32 0.0, %v1686
        %1688 = vmatmul.bf16.gmra.mxu0 %v1544
        %v1689 = vpop.f32.mrf.mxu0
        %v1690 = vadd.f32 0.0, %v1689
        %v1691 = vpop.f32.mrf.mxu0
        %v1692 = vadd.f32 0.0, %v1691
        %1693 = vmatmul.bf16.gmra.mxu0 %v1545
        %v1694 = vpop.f32.mrf.mxu0
        %v1695 = vadd.f32 0.0, %v1694
        %v1696 = vpop.f32.mrf.mxu0
        %v1697 = vadd.f32 0.0, %v1696
        %1698 = vmatmul.bf16.gmra.mxu0 %v1546
        %v1699 = vpop.f32.mrf.mxu0
        %v1700 = vadd.f32 0.0, %v1699
        %v1701 = vpop.f32.mrf.mxu0
        %v1702 = vadd.f32 0.0, %v1701
        %1703 = vmatmul.bf16.gmra.mxu0 %v1547
        %v1704 = vpop.f32.mrf.mxu0
        %v1705 = vadd.f32 0.0, %v1704
        %v1706 = vpop.f32.mrf.mxu0
        %v1707 = vadd.f32 0.0, %v1706
        %1708 = vmatmul.bf16.gmra.mxu0 %v1548
        %v1709 = vpop.f32.mrf.mxu0
        %v1710 = vadd.f32 0.0, %v1709
        %v1711 = vpop.f32.mrf.mxu0
        %v1712 = vadd.f32 0.0, %v1711
        %1713 = vmatmul.bf16.gmra.mxu0 %v1549
        %v1714 = vpop.f32.mrf.mxu0
        %v1715 = vadd.f32 0.0, %v1714
        %v1716 = vpop.f32.mrf.mxu0
        %v1717 = vadd.f32 0.0, %v1716
        %1718 = vmatmul.bf16.gmra.mxu0 %v1550
        %v1719 = vpop.f32.mrf.mxu0
        %v1720 = vadd.f32 0.0, %v1719
        %v1721 = vpop.f32.mrf.mxu0
        %v1722 = vadd.f32 0.0, %v1721
        %1723 = vmatmul.bf16.gmra.mxu0 %v1551
        %v1724 = vpop.f32.mrf.mxu0
        %v1725 = vadd.f32 0.0, %v1724
        %v1726 = vpop.f32.mrf.mxu0
        %v1727 = vadd.f32 0.0, %v1726
        %1728 = vmatmul.bf16.gmra.mxu0 %v1552
        %v1729 = vpop.f32.mrf.mxu0
        %v1730 = vadd.f32 0.0, %v1729
        %v1731 = vpop.f32.mrf.mxu0
        %v1732 = vadd.f32 0.0, %v1731
        %1733 = vmatmul.bf16.gmra.mxu0 %v1553
        %v1734 = vpop.f32.mrf.mxu0
        %v1735 = vadd.f32 0.0, %v1734
        %v1736 = vpop.f32.mrf.mxu0
        %v1737 = vadd.f32 0.0, %v1736
        %1738 = vmatmul.bf16.gmra.mxu0 %v1554
        %v1739 = vpop.f32.mrf.mxu0
        %v1740 = vadd.f32 0.0, %v1739
        %v1741 = vpop.f32.mrf.mxu0
        %v1742 = vadd.f32 0.0, %v1741
        %1743 = vmatmul.bf16.gmra.mxu0 %v1555
        %v1744 = vpop.f32.mrf.mxu0
        %v1745 = vadd.f32 0.0, %v1744
        %v1746 = vpop.f32.mrf.mxu0
        %v1747 = vadd.f32 0.0, %v1746
        %1748 = vdwg.mxu0
        %v1749 = vld [vmem:[#allocation2] sm:$0xff]
        %v1750 = vld [vmem:[#allocation2 + $0x8] sm:$0xff]
        %v1751 = vld [vmem:[#allocation2 + $0x10] sm:$0xff]
        %v1752 = vld [vmem:[#allocation2 + $0x18] sm:$0xff]
        %v1753 = vld [vmem:[#allocation2 + $0x20] sm:$0xff]
        %v1754 = vld [vmem:[#allocation2 + $0x28] sm:$0xff]
        %v1755 = vld [vmem:[#allocation2 + $0x30] sm:$0xff]
        %v1756 = vld [vmem:[#allocation2 + $0x38] sm:$0xff]
        %v1757 = vld [vmem:[#allocation2 + $0x40] sm:$0xff]
        %v1758 = vld [vmem:[#allocation2 + $0x48] sm:$0xff]
        %v1759 = vld [vmem:[#allocation2 + $0x50] sm:$0xff]
        %v1760 = vld [vmem:[#allocation2 + $0x58] sm:$0xff]
        %v1761 = vld [vmem:[#allocation2 + $0x60] sm:$0xff]
        %v1762 = vld [vmem:[#allocation2 + $0x68] sm:$0xff]
        %v1763 = vld [vmem:[#allocation2 + $0x70] sm:$0xff]
        %v1764 = vld [vmem:[#allocation2 + $0x78] sm:$0xff]
        %v1765 = vld [vmem:[#allocation2 + $0x80] sm:$0xff]
        %v1766 = vld [vmem:[#allocation2 + $0x88] sm:$0xff]
        %v1767 = vld [vmem:[#allocation2 + $0x90] sm:$0xff]
        %v1768 = vld [vmem:[#allocation2 + $0x98] sm:$0xff]
        %v1769 = vld [vmem:[#allocation2 + $0xa0] sm:$0xff]
        %v1770 = vld [vmem:[#allocation2 + $0xa8] sm:$0xff]
        %v1771 = vld [vmem:[#allocation2 + $0xb0] sm:$0xff]
        %v1772 = vld [vmem:[#allocation2 + $0xb8] sm:$0xff]
        %v1773 = vld [vmem:[#allocation2 + $0xc0] sm:$0xff]
        %v1774 = vld [vmem:[#allocation2 + $0xc8] sm:$0xff]
        %v1775 = vld [vmem:[#allocation2 + $0xd0] sm:$0xff]
        %v1776 = vld [vmem:[#allocation2 + $0xd8] sm:$0xff]
        %v1777 = vld [vmem:[#allocation2 + $0xe0] sm:$0xff]
        %v1778 = vld [vmem:[#allocation2 + $0xe8] sm:$0xff]
        %v1779 = vld [vmem:[#allocation2 + $0xf0] sm:$0xff]
        %v1780 = vld [vmem:[#allocation2 + $0xf8] sm:$0xff]
        %v1781 = vld [vmem:[#allocation2 + $0x100] sm:$0xff]
        %v1782 = vld [vmem:[#allocation2 + $0x108] sm:$0xff]
        %v1783 = vld [vmem:[#allocation2 + $0x110] sm:$0xff]
        %v1784 = vld [vmem:[#allocation2 + $0x118] sm:$0xff]
        %v1785 = vld [vmem:[#allocation2 + $0x120] sm:$0xff]
        %v1786 = vld [vmem:[#allocation2 + $0x128] sm:$0xff]
        %v1787 = vld [vmem:[#allocation2 + $0x130] sm:$0xff]
        %v1788 = vld [vmem:[#allocation2 + $0x138] sm:$0xff]
        %v1789 = vld [vmem:[#allocation2 + $0x140] sm:$0xff]
        %v1790 = vld [vmem:[#allocation2 + $0x148] sm:$0xff]
        %v1791 = vld [vmem:[#allocation2 + $0x150] sm:$0xff]
        %v1792 = vld [vmem:[#allocation2 + $0x158] sm:$0xff]
        %v1793 = vld [vmem:[#allocation2 + $0x160] sm:$0xff]
        %v1794 = vld [vmem:[#allocation2 + $0x168] sm:$0xff]
        %v1795 = vld [vmem:[#allocation2 + $0x170] sm:$0xff]
        %v1796 = vld [vmem:[#allocation2 + $0x178] sm:$0xff]
        %v1797 = vmul.f32 %v1630, %v1749
        %v1798 = vmul.f32 %v1632, %v1750
        %v1799 = vmul.f32 %v1635, %v1751
        %v1800 = vmul.f32 %v1637, %v1752
        %v1801 = vmul.f32 %v1640, %v1753
        %v1802 = vmul.f32 %v1642, %v1754
        %v1803 = vmul.f32 %v1645, %v1755
        %v1804 = vmul.f32 %v1647, %v1756
        %v1805 = vmul.f32 %v1650, %v1757
        %v1806 = vmul.f32 %v1652, %v1758
        %v1807 = vmul.f32 %v1655, %v1759
        %v1808 = vmul.f32 %v1657, %v1760
        %v1809 = vmul.f32 %v1660, %v1761
        %v1810 = vmul.f32 %v1662, %v1762
        %v1811 = vmul.f32 %v1665, %v1763
        %v1812 = vmul.f32 %v1667, %v1764
        %v1813 = vmul.f32 %v1670, %v1765
        %v1814 = vmul.f32 %v1672, %v1766
        %v1815 = vmul.f32 %v1675, %v1767
        %v1816 = vmul.f32 %v1677, %v1768
        %v1817 = vmul.f32 %v1680, %v1769
        %v1818 = vmul.f32 %v1682, %v1770
        %v1819 = vmul.f32 %v1685, %v1771
        %v1820 = vmul.f32 %v1687, %v1772
        %v1821 = vmul.f32 %v1690, %v1773
        %v1822 = vmul.f32 %v1692, %v1774
        %v1823 = vmul.f32 %v1695, %v1775
        %v1824 = vmul.f32 %v1697, %v1776
        %v1825 = vmul.f32 %v1700, %v1777
        %v1826 = vmul.f32 %v1702, %v1778
        %v1827 = vmul.f32 %v1705, %v1779
        %v1828 = vmul.f32 %v1707, %v1780
        %v1829 = vmul.f32 %v1710, %v1781
        %v1830 = vmul.f32 %v1712, %v1782
        %v1831 = vmul.f32 %v1715, %v1783
        %v1832 = vmul.f32 %v1717, %v1784
        %v1833 = vmul.f32 %v1720, %v1785
        %v1834 = vmul.f32 %v1722, %v1786
        %v1835 = vmul.f32 %v1725, %v1787
        %v1836 = vmul.f32 %v1727, %v1788
        %v1837 = vmul.f32 %v1730, %v1789
        %v1838 = vmul.f32 %v1732, %v1790
        %v1839 = vmul.f32 %v1735, %v1791
        %v1840 = vmul.f32 %v1737, %v1792
        %v1841 = vmul.f32 %v1740, %v1793
        %v1842 = vmul.f32 %v1742, %v1794
        %v1843 = vmul.f32 %v1745, %v1795
        %v1844 = vmul.f32 %v1747, %v1796
        %v1845 = vld [vmem:[%s4] sm:$0xff]
        %v1846 = vld [vmem:[%s4 + $0x8] sm:$0xf]
        %v1847 = vld [vmem:[%s4 + $0xc] sm:$0xff]
        %v1848 = vld [vmem:[%s4 + $0x14] sm:$0xf]
        %v1849 = vld [vmem:[%s4 + $0x18] sm:$0xff]
        %v1850 = vld [vmem:[%s4 + $0x20] sm:$0xf]
        %v1851 = vld [vmem:[%s4 + $0x24] sm:$0xff]
        %v1852 = vld [vmem:[%s4 + $0x2c] sm:$0xf]
        %v1853 = vld [vmem:[%s4 + $0x30] sm:$0xff]
        %v1854 = vld [vmem:[%s4 + $0x38] sm:$0xf]
        %v1855 = vld [vmem:[%s4 + $0x3c] sm:$0xff]
        %v1856 = vld [vmem:[%s4 + $0x44] sm:$0xf]
        %v1857 = vld [vmem:[%s4 + $0x48] sm:$0xff]
        %v1858 = vld [vmem:[%s4 + $0x50] sm:$0xf]
        %v1859 = vld [vmem:[%s4 + $0x54] sm:$0xff]
        %v1860 = vld [vmem:[%s4 + $0x5c] sm:$0xf]
        %v1861 = vld [vmem:[%s4 + $0x60] sm:$0xff]
        %v1862 = vld [vmem:[%s4 + $0x68] sm:$0xf]
        %v1863 = vld [vmem:[%s4 + $0x6c] sm:$0xff]
        %v1864 = vld [vmem:[%s4 + $0x74] sm:$0xf]
        %v1865 = vld [vmem:[%s4 + $0x78] sm:$0xff]
        %v1866 = vld [vmem:[%s4 + $0x80] sm:$0xf]
        %v1867 = vld [vmem:[%s4 + $0x84] sm:$0xff]
        %v1868 = vld [vmem:[%s4 + $0x8c] sm:$0xf]
        %v1869 = vld [vmem:[%s4 + $0x90] sm:$0xff]
        %v1870 = vld [vmem:[%s4 + $0x98] sm:$0xf]
        %v1871 = vld [vmem:[%s4 + $0x9c] sm:$0xff]
        %v1872 = vld [vmem:[%s4 + $0xa4] sm:$0xf]
        %v1873 = vld [vmem:[%s4 + $0xa8] sm:$0xff]
        %v1874 = vld [vmem:[%s4 + $0xb0] sm:$0xf]
        %v1875 = vld [vmem:[%s4 + $0xb4] sm:$0xff]
        %v1876 = vld [vmem:[%s4 + $0xbc] sm:$0xf]
        %v1877 = vld [vmem:[%s4 + $0xc0] sm:$0xff]
        %v1878 = vld [vmem:[%s4 + $0xc8] sm:$0xf]
        %v1879 = vld [vmem:[%s4 + $0xcc] sm:$0xff]
        %v1880 = vld [vmem:[%s4 + $0xd4] sm:$0xf]
        %v1881 = vld [vmem:[%s4 + $0xd8] sm:$0xff]
        %v1882 = vld [vmem:[%s4 + $0xe0] sm:$0xf]
        %v1883 = vld [vmem:[%s4 + $0xe4] sm:$0xff]
        %v1884 = vld [vmem:[%s4 + $0xec] sm:$0xf]
        %v1885 = vld [vmem:[%s4 + $0xf0] sm:$0xff]
        %v1886 = vld [vmem:[%s4 + $0xf8] sm:$0xf]
        %v1887 = vld [vmem:[%s4 + $0xfc] sm:$0xff]
        %v1888 = vld [vmem:[%s4 + $0x104] sm:$0xf]
        %v1889 = vld [vmem:[%s4 + $0x108] sm:$0xff]
        %v1890 = vld [vmem:[%s4 + $0x110] sm:$0xf]
        %v1891 = vld [vmem:[%s4 + $0x114] sm:$0xff]
        %v1892 = vld [vmem:[%s4 + $0x11c] sm:$0xf]
        %v1893 = vld [vmem:[%s4 + $0x120] sm:$0xff]
        %v1894 = vld [vmem:[%s4 + $0x128] sm:$0xf]
        %v1895 = vld [vmem:[%s4 + $0x12c] sm:$0xff]
        %v1896 = vld [vmem:[%s4 + $0x134] sm:$0xf]
        %v1897 = vld [vmem:[%s4 + $0x138] sm:$0xff]
        %v1898 = vld [vmem:[%s4 + $0x140] sm:$0xf]
        %v1899 = vld [vmem:[%s4 + $0x144] sm:$0xff]
        %v1900 = vld [vmem:[%s4 + $0x14c] sm:$0xf]
        %v1901 = vld [vmem:[%s4 + $0x150] sm:$0xff]
        %v1902 = vld [vmem:[%s4 + $0x158] sm:$0xf]
        %v1903 = vld [vmem:[%s4 + $0x15c] sm:$0xff]
        %v1904 = vld [vmem:[%s4 + $0x164] sm:$0xf]
        %v1905 = vld [vmem:[%s4 + $0x168] sm:$0xff]
        %v1906 = vld [vmem:[%s4 + $0x170] sm:$0xf]
        %v1907 = vld [vmem:[%s4 + $0x174] sm:$0xff]
        %v1908 = vld [vmem:[%s4 + $0x17c] sm:$0xf]
        %v1909 = vld [vmem:[%s4 + $0x180] sm:$0xff]
        %v1910 = vld [vmem:[%s4 + $0x188] sm:$0xf]
        %v1911 = vld [vmem:[%s4 + $0x18c] sm:$0xff]
        %v1912 = vld [vmem:[%s4 + $0x194] sm:$0xf]
        %v1913 = vld [vmem:[%s4 + $0x198] sm:$0xff]
        %v1914 = vld [vmem:[%s4 + $0x1a0] sm:$0xf]
        %v1915 = vld [vmem:[%s4 + $0x1a4] sm:$0xff]
        %v1916 = vld [vmem:[%s4 + $0x1ac] sm:$0xf]
        %v1917 = vld [vmem:[%s4 + $0x1b0] sm:$0xff]
        %v1918 = vld [vmem:[%s4 + $0x1b8] sm:$0xf]
        %v1919 = vld [vmem:[%s4 + $0x1bc] sm:$0xff]
        %v1920 = vld [vmem:[%s4 + $0x1c4] sm:$0xf]
        %v1921 = vld [vmem:[%s4 + $0x1c8] sm:$0xff]
        %v1922 = vld [vmem:[%s4 + $0x1d0] sm:$0xf]
        %v1923 = vld [vmem:[%s4 + $0x1d4] sm:$0xff]
        %v1924 = vld [vmem:[%s4 + $0x1dc] sm:$0xf]
        %v1925 = vld [vmem:[%s4 + $0x1e0] sm:$0xff]
        %v1926 = vld [vmem:[%s4 + $0x1e8] sm:$0xf]
        %v1927 = vld [vmem:[%s4 + $0x1ec] sm:$0xff]
        %v1928 = vld [vmem:[%s4 + $0x1f4] sm:$0xf]
        %v1929 = vld [vmem:[%s4 + $0x1f8] sm:$0xff]
        %v1930 = vld [vmem:[%s4 + $0x200] sm:$0xf]
        %v1931 = vld [vmem:[%s4 + $0x204] sm:$0xff]
        %v1932 = vld [vmem:[%s4 + $0x20c] sm:$0xf]
        %v1933 = vld [vmem:[%s4 + $0x210] sm:$0xff]
        %v1934 = vld [vmem:[%s4 + $0x218] sm:$0xf]
        %v1935 = vld [vmem:[%s4 + $0x21c] sm:$0xff]
        %v1936 = vld [vmem:[%s4 + $0x224] sm:$0xf]
        %v1937 = vld [vmem:[%s4 + $0x228] sm:$0xff]
        %v1938 = vld [vmem:[%s4 + $0x230] sm:$0xf]
        %v1939 = vld [vmem:[%s4 + $0x234] sm:$0xff]
        %v1940 = vld [vmem:[%s4 + $0x23c] sm:$0xf]
        %v1941 = vpack.c.bf16 %v1798, %v1797
        %v1942 = vpack.c.bf16 %v1800, %v1799
        %v1943 = vpack.c.bf16 %v1802, %v1801
        %v1944 = vpack.c.bf16 %v1804, %v1803
        %v1945 = vpack.c.bf16 %v1806, %v1805
        %v1946 = vpack.c.bf16 %v1808, %v1807
        %v1947 = vpack.c.bf16 %v1810, %v1809
        %v1948 = vpack.c.bf16 %v1812, %v1811
        %v1949 = vpack.c.bf16 %v1814, %v1813
        %v1950 = vpack.c.bf16 %v1816, %v1815
        %v1951 = vpack.c.bf16 %v1818, %v1817
        %v1952 = vpack.c.bf16 %v1820, %v1819
        %v1953 = vpack.c.bf16 %v1822, %v1821
        %v1954 = vpack.c.bf16 %v1824, %v1823
        %v1955 = vpack.c.bf16 %v1826, %v1825
        %v1956 = vpack.c.bf16 %v1828, %v1827
        %v1957 = vpack.c.bf16 %v1830, %v1829
        %v1958 = vpack.c.bf16 %v1832, %v1831
        %v1959 = vpack.c.bf16 %v1834, %v1833
        %v1960 = vpack.c.bf16 %v1836, %v1835
        %v1961 = vpack.c.bf16 %v1838, %v1837
        %v1962 = vpack.c.bf16 %v1840, %v1839
        %v1963 = vpack.c.bf16 %v1842, %v1841
        %v1964 = vpack.c.bf16 %v1844, %v1843
        %v2061 = vunpack.c.l.b16 %v1845
        %v2062 = vunpack.c.h.b16 %v1845
        %v2063 = vunpack.c.l.b16 %v1846
        %v2064 = vunpack.c.l.b16 %v1847
        %v2065 = vunpack.c.h.b16 %v1847
        %v2066 = vunpack.c.l.b16 %v1848
        %v2067 = vunpack.c.l.b16 %v1849
        %v2068 = vunpack.c.h.b16 %v1849
        %v2069 = vunpack.c.l.b16 %v1850
        %v2070 = vunpack.c.l.b16 %v1851
        %v2071 = vunpack.c.h.b16 %v1851
        %v2072 = vunpack.c.l.b16 %v1852
        %v2073 = vunpack.c.l.b16 %v1853
        %v2074 = vunpack.c.h.b16 %v1853
        %v2075 = vunpack.c.l.b16 %v1854
        %v2076 = vunpack.c.l.b16 %v1855
        %v2077 = vunpack.c.h.b16 %v1855
        %v2078 = vunpack.c.l.b16 %v1856
        %v2079 = vunpack.c.l.b16 %v1857
        %v2080 = vunpack.c.h.b16 %v1857
        %v2081 = vunpack.c.l.b16 %v1858
        %v2082 = vunpack.c.l.b16 %v1859
        %v2083 = vunpack.c.h.b16 %v1859
        %v2084 = vunpack.c.l.b16 %v1860
        %v2085 = vunpack.c.l.b16 %v1861
        %v2086 = vunpack.c.h.b16 %v1861
        %v2087 = vunpack.c.l.b16 %v1862
        %v2088 = vunpack.c.l.b16 %v1863
        %v2089 = vunpack.c.h.b16 %v1863
        %v2090 = vunpack.c.l.b16 %v1864
        %v2091 = vunpack.c.l.b16 %v1865
        %v2092 = vunpack.c.h.b16 %v1865
        %v2093 = vunpack.c.l.b16 %v1866
        %v2094 = vunpack.c.l.b16 %v1867
        %v2095 = vunpack.c.h.b16 %v1867
        %v2096 = vunpack.c.l.b16 %v1868
        %v2097 = vunpack.c.l.b16 %v1869
        %v2098 = vunpack.c.h.b16 %v1869
        %v2099 = vunpack.c.l.b16 %v1870
        %v2100 = vunpack.c.l.b16 %v1871
        %v2101 = vunpack.c.h.b16 %v1871
        %v2102 = vunpack.c.l.b16 %v1872
        %v2103 = vunpack.c.l.b16 %v1873
        %v2104 = vunpack.c.h.b16 %v1873
        %v2105 = vunpack.c.l.b16 %v1874
        %v2106 = vunpack.c.l.b16 %v1875
        %v2107 = vunpack.c.h.b16 %v1875
        %v2108 = vunpack.c.l.b16 %v1876
        %v2109 = vunpack.c.l.b16 %v1877
        %v2110 = vunpack.c.h.b16 %v1877
        %v2111 = vunpack.c.l.b16 %v1878
        %v2112 = vunpack.c.l.b16 %v1879
        %v2113 = vunpack.c.h.b16 %v1879
        %v2114 = vunpack.c.l.b16 %v1880
        %v2115 = vunpack.c.l.b16 %v1881
        %v2116 = vunpack.c.h.b16 %v1881
        %v2117 = vunpack.c.l.b16 %v1882
        %v2118 = vunpack.c.l.b16 %v1883
        %v2119 = vunpack.c.h.b16 %v1883
        %v2120 = vunpack.c.l.b16 %v1884
        %v2121 = vunpack.c.l.b16 %v1885
        %v2122 = vunpack.c.h.b16 %v1885
        %v2123 = vunpack.c.l.b16 %v1886
        %v2124 = vunpack.c.l.b16 %v1887
        %v2125 = vunpack.c.h.b16 %v1887
        %v2126 = vunpack.c.l.b16 %v1888
        %v2127 = vunpack.c.l.b16 %v1889
        %v2128 = vunpack.c.h.b16 %v1889
        %v2129 = vunpack.c.l.b16 %v1890
        %v2130 = vunpack.c.l.b16 %v1891
        %v2131 = vunpack.c.h.b16 %v1891
        %v2132 = vunpack.c.l.b16 %v1892
        %v2133 = vunpack.c.l.b16 %v1893
        %v2134 = vunpack.c.h.b16 %v1893
        %v2135 = vunpack.c.l.b16 %v1894
        %v2136 = vunpack.c.l.b16 %v1895
        %v2137 = vunpack.c.h.b16 %v1895
        %v2138 = vunpack.c.l.b16 %v1896
        %v2139 = vunpack.c.l.b16 %v1897
        %v2140 = vunpack.c.h.b16 %v1897
        %v2141 = vunpack.c.l.b16 %v1898
        %v2142 = vunpack.c.l.b16 %v1899
        %v2143 = vunpack.c.h.b16 %v1899
        %v2144 = vunpack.c.l.b16 %v1900
        %v2145 = vunpack.c.l.b16 %v1901
        %v2146 = vunpack.c.h.b16 %v1901
        %v2147 = vunpack.c.l.b16 %v1902
        %v2148 = vunpack.c.l.b16 %v1903
        %v2149 = vunpack.c.h.b16 %v1903
        %v2150 = vunpack.c.l.b16 %v1904
        %v2151 = vunpack.c.l.b16 %v1905
        %v2152 = vunpack.c.h.b16 %v1905
        %v2153 = vunpack.c.l.b16 %v1906
        %v2154 = vunpack.c.l.b16 %v1907
        %v2155 = vunpack.c.h.b16 %v1907
        %v2156 = vunpack.c.l.b16 %v1908
        %v2157 = vunpack.c.l.b16 %v1909
        %v2158 = vunpack.c.h.b16 %v1909
        %v2159 = vunpack.c.l.b16 %v1910
        %v2160 = vunpack.c.l.b16 %v1911
        %v2161 = vunpack.c.h.b16 %v1911
        %v2162 = vunpack.c.l.b16 %v1912
        %v2163 = vunpack.c.l.b16 %v1913
        %v2164 = vunpack.c.h.b16 %v1913
        %v2165 = vunpack.c.l.b16 %v1914
        %v2166 = vunpack.c.l.b16 %v1915
        %v2167 = vunpack.c.h.b16 %v1915
        %v2168 = vunpack.c.l.b16 %v1916
        %v2169 = vunpack.c.l.b16 %v1917
        %v2170 = vunpack.c.h.b16 %v1917
        %v2171 = vunpack.c.l.b16 %v1918
        %v2172 = vunpack.c.l.b16 %v1919
        %v2173 = vunpack.c.h.b16 %v1919
        %v2174 = vunpack.c.l.b16 %v1920
        %v2175 = vunpack.c.l.b16 %v1921
        %v2176 = vunpack.c.h.b16 %v1921
        %v2177 = vunpack.c.l.b16 %v1922
        %v2178 = vunpack.c.l.b16 %v1923
        %v2179 = vunpack.c.h.b16 %v1923
        %v2180 = vunpack.c.l.b16 %v1924
        %v2181 = vunpack.c.l.b16 %v1925
        %v2182 = vunpack.c.h.b16 %v1925
        %v2183 = vunpack.c.l.b16 %v1926
        %v2184 = vunpack.c.l.b16 %v1927
        %v2185 = vunpack.c.h.b16 %v1927
        %v2186 = vunpack.c.l.b16 %v1928
        %v2187 = vunpack.c.l.b16 %v1929
        %v2188 = vunpack.c.h.b16 %v1929
        %v2189 = vunpack.c.l.b16 %v1930
        %v2190 = vunpack.c.l.b16 %v1931
        %v2191 = vunpack.c.h.b16 %v1931
        %v2192 = vunpack.c.l.b16 %v1932
        %v2193 = vunpack.c.l.b16 %v1933
        %v2194 = vunpack.c.h.b16 %v1933
        %v2195 = vunpack.c.l.b16 %v1934
        %v2196 = vunpack.c.l.b16 %v1935
        %v2197 = vunpack.c.h.b16 %v1935
        %v2198 = vunpack.c.l.b16 %v1936
        %v2199 = vunpack.c.l.b16 %v1937
        %v2200 = vunpack.c.h.b16 %v1937
        %v2201 = vunpack.c.l.b16 %v1938
        %v2202 = vunpack.c.l.b16 %v1939
        %v2203 = vunpack.c.h.b16 %v1939
        %v2204 = vunpack.c.l.b16 %v1940
        %v2205 = vpack.c.b16 %v2064, %v2061
        %v2206 = vpack.c.b16 %v2065, %v2062
        %v2207 = vpack.c.b16 %v2066, %v2063
        %v2208 = vpack.c.b16 %v2070, %v2067
        %v2209 = vpack.c.b16 %v2071, %v2068
        %v2210 = vpack.c.b16 %v2072, %v2069
        %v2211 = vpack.c.b16 %v2076, %v2073
        %v2212 = vpack.c.b16 %v2077, %v2074
        %v2213 = vpack.c.b16 %v2078, %v2075
        %v2214 = vpack.c.b16 %v2082, %v2079
        %v2215 = vpack.c.b16 %v2083, %v2080
        %v2216 = vpack.c.b16 %v2084, %v2081
        %v2217 = vpack.c.b16 %v2088, %v2085
        %v2218 = vpack.c.b16 %v2089, %v2086
        %v2219 = vpack.c.b16 %v2090, %v2087
        %v2220 = vpack.c.b16 %v2094, %v2091
        %v2221 = vpack.c.b16 %v2095, %v2092
        %v2222 = vpack.c.b16 %v2096, %v2093
        %v2223 = vpack.c.b16 %v2100, %v2097
        %v2224 = vpack.c.b16 %v2101, %v2098
        %v2225 = vpack.c.b16 %v2102, %v2099
        %v2226 = vpack.c.b16 %v2106, %v2103
        %v2227 = vpack.c.b16 %v2107, %v2104
        %v2228 = vpack.c.b16 %v2108, %v2105
        %v2229 = vpack.c.b16 %v2112, %v2109
        %v2230 = vpack.c.b16 %v2113, %v2110
        %v2231 = vpack.c.b16 %v2114, %v2111
        %v2232 = vpack.c.b16 %v2118, %v2115
        %v2233 = vpack.c.b16 %v2119, %v2116
        %v2234 = vpack.c.b16 %v2120, %v2117
        %v2235 = vpack.c.b16 %v2124, %v2121
        %v2236 = vpack.c.b16 %v2125, %v2122
        %v2237 = vpack.c.b16 %v2126, %v2123
        %v2238 = vpack.c.b16 %v2130, %v2127
        %v2239 = vpack.c.b16 %v2131, %v2128
        %v2240 = vpack.c.b16 %v2132, %v2129
        %v2241 = vpack.c.b16 %v2136, %v2133
        %v2242 = vpack.c.b16 %v2137, %v2134
        %v2243 = vpack.c.b16 %v2138, %v2135
        %v2244 = vpack.c.b16 %v2142, %v2139
        %v2245 = vpack.c.b16 %v2143, %v2140
        %v2246 = vpack.c.b16 %v2144, %v2141
        %v2247 = vpack.c.b16 %v2148, %v2145
        %v2248 = vpack.c.b16 %v2149, %v2146
        %v2249 = vpack.c.b16 %v2150, %v2147
        %v2250 = vpack.c.b16 %v2154, %v2151
        %v2251 = vpack.c.b16 %v2155, %v2152
        %v2252 = vpack.c.b16 %v2156, %v2153
        %v2253 = vpack.c.b16 %v2160, %v2157
        %v2254 = vpack.c.b16 %v2161, %v2158
        %v2255 = vpack.c.b16 %v2162, %v2159
        %v2256 = vpack.c.b16 %v2166, %v2163
        %v2257 = vpack.c.b16 %v2167, %v2164
        %v2258 = vpack.c.b16 %v2168, %v2165
        %v2259 = vpack.c.b16 %v2172, %v2169
        %v2260 = vpack.c.b16 %v2173, %v2170
        %v2261 = vpack.c.b16 %v2174, %v2171
        %v2262 = vpack.c.b16 %v2178, %v2175
        %v2263 = vpack.c.b16 %v2179, %v2176
        %v2264 = vpack.c.b16 %v2180, %v2177
        %v2265 = vpack.c.b16 %v2184, %v2181
        %v2266 = vpack.c.b16 %v2185, %v2182
        %v2267 = vpack.c.b16 %v2186, %v2183
        %v2268 = vpack.c.b16 %v2190, %v2187
        %v2269 = vpack.c.b16 %v2191, %v2188
        %v2270 = vpack.c.b16 %v2192, %v2189
        %v2271 = vpack.c.b16 %v2196, %v2193
        %v2272 = vpack.c.b16 %v2197, %v2194
        %v2273 = vpack.c.b16 %v2198, %v2195
        %v2274 = vpack.c.b16 %v2202, %v2199
        %v2275 = vpack.c.b16 %v2203, %v2200
        %v2276 = vpack.c.b16 %v2204, %v2201
        %2349 = vmatpush.bf16.msra.mxu0 %v1948
        %2350 = vmatpush.bf16.msra.mxu0 %v1947
        %2351 = vmatpush.bf16.msra.mxu0 %v1946
        %2352 = vmatpush.bf16.msra.mxu0 %v1945
        %2353 = vmatpush.bf16.msra.mxu0 %v1944
        %2354 = vmatpush.bf16.msra.mxu0 %v1943
        %2355 = vmatpush.bf16.msra.mxu0 %v1942
        %2356 = vmatpush.bf16.msra.mxu0 %v1941
        %2357 = vmatmul.bf16.gmra.mxu0 %v2205
        %v2358 = vpop.f32.mrf.mxu0
        %v2359 = vadd.f32 0.0, %v2358
        %v2360 = vpop.f32.mrf.mxu0
        %v2361 = vadd.f32 0.0, %v2360
        %2362 = vmatmul.bf16.gmra.mxu0 %v2208
        %v2363 = vpop.f32.mrf.mxu0
        %v2364 = vadd.f32 0.0, %v2363
        %v2365 = vpop.f32.mrf.mxu0
        %v2366 = vadd.f32 0.0, %v2365
        %2367 = vmatmul.bf16.gmra.mxu0 %v2211
        %v2368 = vpop.f32.mrf.mxu0
        %v2369 = vadd.f32 0.0, %v2368
        %v2370 = vpop.f32.mrf.mxu0
        %v2371 = vadd.f32 0.0, %v2370
        %2372 = vmatmul.bf16.gmra.mxu0 %v2214
        %v2373 = vpop.f32.mrf.mxu0
        %v2374 = vadd.f32 0.0, %v2373
        %v2375 = vpop.f32.mrf.mxu0
        %v2376 = vadd.f32 0.0, %v2375
        %2377 = vmatmul.bf16.gmra.mxu0 %v2217
        %v2378 = vpop.f32.mrf.mxu0
        %v2379 = vadd.f32 0.0, %v2378
        %v2380 = vpop.f32.mrf.mxu0
        %v2381 = vadd.f32 0.0, %v2380
        %2382 = vmatmul.bf16.gmra.mxu0 %v2220
        %v2383 = vpop.f32.mrf.mxu0
        %v2384 = vadd.f32 0.0, %v2383
        %v2385 = vpop.f32.mrf.mxu0
        %v2386 = vadd.f32 0.0, %v2385
        %2387 = vmatmul.bf16.gmra.mxu0 %v2223
        %v2388 = vpop.f32.mrf.mxu0
        %v2389 = vadd.f32 0.0, %v2388
        %v2390 = vpop.f32.mrf.mxu0
        %v2391 = vadd.f32 0.0, %v2390
        %2392 = vmatmul.bf16.gmra.mxu0 %v2226
        %v2393 = vpop.f32.mrf.mxu0
        %v2394 = vadd.f32 0.0, %v2393
        %v2395 = vpop.f32.mrf.mxu0
        %v2396 = vadd.f32 0.0, %v2395
        %2397 = vmatmul.bf16.gmra.mxu0 %v2229
        %v2398 = vpop.f32.mrf.mxu0
        %v2399 = vadd.f32 0.0, %v2398
        %v2400 = vpop.f32.mrf.mxu0
        %v2401 = vadd.f32 0.0, %v2400
        %2402 = vmatmul.bf16.gmra.mxu0 %v2232
        %v2403 = vpop.f32.mrf.mxu0
        %v2404 = vadd.f32 0.0, %v2403
        %v2405 = vpop.f32.mrf.mxu0
        %v2406 = vadd.f32 0.0, %v2405
        %2407 = vmatmul.bf16.gmra.mxu0 %v2235
        %v2408 = vpop.f32.mrf.mxu0
        %v2409 = vadd.f32 0.0, %v2408
        %v2410 = vpop.f32.mrf.mxu0
        %v2411 = vadd.f32 0.0, %v2410
        %2412 = vmatmul.bf16.gmra.mxu0 %v2238
        %v2413 = vpop.f32.mrf.mxu0
        %v2414 = vadd.f32 0.0, %v2413
        %v2415 = vpop.f32.mrf.mxu0
        %v2416 = vadd.f32 0.0, %v2415
        %2417 = vmatmul.bf16.gmra.mxu0 %v2241
        %v2418 = vpop.f32.mrf.mxu0
        %v2419 = vadd.f32 0.0, %v2418
        %v2420 = vpop.f32.mrf.mxu0
        %v2421 = vadd.f32 0.0, %v2420
        %2422 = vmatmul.bf16.gmra.mxu0 %v2244
        %v2423 = vpop.f32.mrf.mxu0
        %v2424 = vadd.f32 0.0, %v2423
        %v2425 = vpop.f32.mrf.mxu0
        %v2426 = vadd.f32 0.0, %v2425
        %2427 = vmatmul.bf16.gmra.mxu0 %v2247
        %v2428 = vpop.f32.mrf.mxu0
        %v2429 = vadd.f32 0.0, %v2428
        %v2430 = vpop.f32.mrf.mxu0
        %v2431 = vadd.f32 0.0, %v2430
        %2432 = vmatmul.bf16.gmra.mxu0 %v2250
        %v2433 = vpop.f32.mrf.mxu0
        %v2434 = vadd.f32 0.0, %v2433
        %v2435 = vpop.f32.mrf.mxu0
        %v2436 = vadd.f32 0.0, %v2435
        %2437 = vmatmul.bf16.gmra.mxu0 %v2253
        %v2438 = vpop.f32.mrf.mxu0
        %v2439 = vadd.f32 0.0, %v2438
        %v2440 = vpop.f32.mrf.mxu0
        %v2441 = vadd.f32 0.0, %v2440
        %2442 = vmatmul.bf16.gmra.mxu0 %v2256
        %v2443 = vpop.f32.mrf.mxu0
        %v2444 = vadd.f32 0.0, %v2443
        %v2445 = vpop.f32.mrf.mxu0
        %v2446 = vadd.f32 0.0, %v2445
        %2447 = vmatmul.bf16.gmra.mxu0 %v2259
        %v2448 = vpop.f32.mrf.mxu0
        %v2449 = vadd.f32 0.0, %v2448
        %v2450 = vpop.f32.mrf.mxu0
        %v2451 = vadd.f32 0.0, %v2450
        %2452 = vmatmul.bf16.gmra.mxu0 %v2262
        %v2453 = vpop.f32.mrf.mxu0
        %v2454 = vadd.f32 0.0, %v2453
        %v2455 = vpop.f32.mrf.mxu0
        %v2456 = vadd.f32 0.0, %v2455
        %2457 = vmatmul.bf16.gmra.mxu0 %v2265
        %v2458 = vpop.f32.mrf.mxu0
        %v2459 = vadd.f32 0.0, %v2458
        %v2460 = vpop.f32.mrf.mxu0
        %v2461 = vadd.f32 0.0, %v2460
        %2462 = vmatmul.bf16.gmra.mxu0 %v2268
        %v2463 = vpop.f32.mrf.mxu0
        %v2464 = vadd.f32 0.0, %v2463
        %v2465 = vpop.f32.mrf.mxu0
        %v2466 = vadd.f32 0.0, %v2465
        %2467 = vmatmul.bf16.gmra.mxu0 %v2271
        %v2468 = vpop.f32.mrf.mxu0
        %v2469 = vadd.f32 0.0, %v2468
        %v2470 = vpop.f32.mrf.mxu0
        %v2471 = vadd.f32 0.0, %v2470
        %2472 = vmatmul.bf16.gmra.mxu0 %v2274
        %v2473 = vpop.f32.mrf.mxu0
        %v2474 = vadd.f32 0.0, %v2473
        %v2475 = vpop.f32.mrf.mxu0
        %v2476 = vadd.f32 0.0, %v2475
        %2477 = vdwg.mxu0
        %2478 = vmatpush.bf16.msra.mxu0 %v1956
        %2479 = vmatpush.bf16.msra.mxu0 %v1955
        %2480 = vmatpush.bf16.msra.mxu0 %v1954
        %2481 = vmatpush.bf16.msra.mxu0 %v1953
        %2482 = vmatpush.bf16.msra.mxu0 %v1952
        %2483 = vmatpush.bf16.msra.mxu0 %v1951
        %2484 = vmatpush.bf16.msra.mxu0 %v1950
        %2485 = vmatpush.bf16.msra.mxu0 %v1949
        %2486 = vmatmul.bf16.gmra.mxu0 %v2206
        %v2487 = vpop.f32.mrf.mxu0
        %v2488 = vadd.f32 %v2359, %v2487
        %v2489 = vpop.f32.mrf.mxu0
        %v2490 = vadd.f32 %v2361, %v2489
        %2491 = vmatmul.bf16.gmra.mxu0 %v2209
        %v2492 = vpop.f32.mrf.mxu0
        %v2493 = vadd.f32 %v2364, %v2492
        %v2494 = vpop.f32.mrf.mxu0
        %v2495 = vadd.f32 %v2366, %v2494
        %2496 = vmatmul.bf16.gmra.mxu0 %v2212
        %v2497 = vpop.f32.mrf.mxu0
        %v2498 = vadd.f32 %v2369, %v2497
        %v2499 = vpop.f32.mrf.mxu0
        %v2500 = vadd.f32 %v2371, %v2499
        %2501 = vmatmul.bf16.gmra.mxu0 %v2215
        %v2502 = vpop.f32.mrf.mxu0
        %v2503 = vadd.f32 %v2374, %v2502
        %v2504 = vpop.f32.mrf.mxu0
        %v2505 = vadd.f32 %v2376, %v2504
        %2506 = vmatmul.bf16.gmra.mxu0 %v2218
        %v2507 = vpop.f32.mrf.mxu0
        %v2508 = vadd.f32 %v2379, %v2507
        %v2509 = vpop.f32.mrf.mxu0
        %v2510 = vadd.f32 %v2381, %v2509
        %2511 = vmatmul.bf16.gmra.mxu0 %v2221
        %v2512 = vpop.f32.mrf.mxu0
        %v2513 = vadd.f32 %v2384, %v2512
        %v2514 = vpop.f32.mrf.mxu0
        %v2515 = vadd.f32 %v2386, %v2514
        %2516 = vmatmul.bf16.gmra.mxu0 %v2224
        %v2517 = vpop.f32.mrf.mxu0
        %v2518 = vadd.f32 %v2389, %v2517
        %v2519 = vpop.f32.mrf.mxu0
        %v2520 = vadd.f32 %v2391, %v2519
        %2521 = vmatmul.bf16.gmra.mxu0 %v2227
        %v2522 = vpop.f32.mrf.mxu0
        %v2523 = vadd.f32 %v2394, %v2522
        %v2524 = vpop.f32.mrf.mxu0
        %v2525 = vadd.f32 %v2396, %v2524
        %2526 = vmatmul.bf16.gmra.mxu0 %v2230
        %v2527 = vpop.f32.mrf.mxu0
        %v2528 = vadd.f32 %v2399, %v2527
        %v2529 = vpop.f32.mrf.mxu0
        %v2530 = vadd.f32 %v2401, %v2529
        %2531 = vmatmul.bf16.gmra.mxu0 %v2233
        %v2532 = vpop.f32.mrf.mxu0
        %v2533 = vadd.f32 %v2404, %v2532
        %v2534 = vpop.f32.mrf.mxu0
        %v2535 = vadd.f32 %v2406, %v2534
        %2536 = vmatmul.bf16.gmra.mxu0 %v2236
        %v2537 = vpop.f32.mrf.mxu0
        %v2538 = vadd.f32 %v2409, %v2537
        %v2539 = vpop.f32.mrf.mxu0
        %v2540 = vadd.f32 %v2411, %v2539
        %2541 = vmatmul.bf16.gmra.mxu0 %v2239
        %v2542 = vpop.f32.mrf.mxu0
        %v2543 = vadd.f32 %v2414, %v2542
        %v2544 = vpop.f32.mrf.mxu0
        %v2545 = vadd.f32 %v2416, %v2544
        %2546 = vmatmul.bf16.gmra.mxu0 %v2242
        %v2547 = vpop.f32.mrf.mxu0
        %v2548 = vadd.f32 %v2419, %v2547
        %v2549 = vpop.f32.mrf.mxu0
        %v2550 = vadd.f32 %v2421, %v2549
        %2551 = vmatmul.bf16.gmra.mxu0 %v2245
        %v2552 = vpop.f32.mrf.mxu0
        %v2553 = vadd.f32 %v2424, %v2552
        %v2554 = vpop.f32.mrf.mxu0
        %v2555 = vadd.f32 %v2426, %v2554
        %2556 = vmatmul.bf16.gmra.mxu0 %v2248
        %v2557 = vpop.f32.mrf.mxu0
        %v2558 = vadd.f32 %v2429, %v2557
        %v2559 = vpop.f32.mrf.mxu0
        %v2560 = vadd.f32 %v2431, %v2559
        %2561 = vmatmul.bf16.gmra.mxu0 %v2251
        %v2562 = vpop.f32.mrf.mxu0
        %v2563 = vadd.f32 %v2434, %v2562
        %v2564 = vpop.f32.mrf.mxu0
        %v2565 = vadd.f32 %v2436, %v2564
        %2566 = vmatmul.bf16.gmra.mxu0 %v2254
        %v2567 = vpop.f32.mrf.mxu0
        %v2568 = vadd.f32 %v2439, %v2567
        %v2569 = vpop.f32.mrf.mxu0
        %v2570 = vadd.f32 %v2441, %v2569
        %2571 = vmatmul.bf16.gmra.mxu0 %v2257
        %v2572 = vpop.f32.mrf.mxu0
        %v2573 = vadd.f32 %v2444, %v2572
        %v2574 = vpop.f32.mrf.mxu0
        %v2575 = vadd.f32 %v2446, %v2574
        %2576 = vmatmul.bf16.gmra.mxu0 %v2260
        %v2577 = vpop.f32.mrf.mxu0
        %v2578 = vadd.f32 %v2449, %v2577
        %v2579 = vpop.f32.mrf.mxu0
        %v2580 = vadd.f32 %v2451, %v2579
        %2581 = vmatmul.bf16.gmra.mxu0 %v2263
        %v2582 = vpop.f32.mrf.mxu0
        %v2583 = vadd.f32 %v2454, %v2582
        %v2584 = vpop.f32.mrf.mxu0
        %v2585 = vadd.f32 %v2456, %v2584
        %2586 = vmatmul.bf16.gmra.mxu0 %v2266
        %v2587 = vpop.f32.mrf.mxu0
        %v2588 = vadd.f32 %v2459, %v2587
        %v2589 = vpop.f32.mrf.mxu0
        %v2590 = vadd.f32 %v2461, %v2589
        %2591 = vmatmul.bf16.gmra.mxu0 %v2269
        %v2592 = vpop.f32.mrf.mxu0
        %v2593 = vadd.f32 %v2464, %v2592
        %v2594 = vpop.f32.mrf.mxu0
        %v2595 = vadd.f32 %v2466, %v2594
        %2596 = vmatmul.bf16.gmra.mxu0 %v2272
        %v2597 = vpop.f32.mrf.mxu0
        %v2598 = vadd.f32 %v2469, %v2597
        %v2599 = vpop.f32.mrf.mxu0
        %v2600 = vadd.f32 %v2471, %v2599
        %2601 = vmatmul.bf16.gmra.mxu0 %v2275
        %v2602 = vpop.f32.mrf.mxu0
        %v2603 = vadd.f32 %v2474, %v2602
        %v2604 = vpop.f32.mrf.mxu0
        %v2605 = vadd.f32 %v2476, %v2604
        %2606 = vdwg.mxu0
        %2607 = vmatpush.bf16.msra.mxu0 %v1964
        %2608 = vmatpush.bf16.msra.mxu0 %v1963
        %2609 = vmatpush.bf16.msra.mxu0 %v1962
        %2610 = vmatpush.bf16.msra.mxu0 %v1961
        %2611 = vmatpush.bf16.msra.mxu0 %v1960
        %2612 = vmatpush.bf16.msra.mxu0 %v1959
        %2613 = vmatpush.bf16.msra.mxu0 %v1958
        %2614 = vmatpush.bf16.msra.mxu0 %v1957
        %2615 = vmatmul.bf16.gmra.mxu0 %v2207
        %v2616 = vpop.f32.mrf.mxu0
        %v2617 = vadd.f32 %v2488, %v2616
        %v2618 = vpop.f32.mrf.mxu0
        %v2619 = vadd.f32 %v2490, %v2618
        %2620 = vmatmul.bf16.gmra.mxu0 %v2210
        %v2621 = vpop.f32.mrf.mxu0
        %v2622 = vadd.f32 %v2493, %v2621
        %v2623 = vpop.f32.mrf.mxu0
        %v2624 = vadd.f32 %v2495, %v2623
        %2625 = vmatmul.bf16.gmra.mxu0 %v2213
        %v2626 = vpop.f32.mrf.mxu0
        %v2627 = vadd.f32 %v2498, %v2626
        %v2628 = vpop.f32.mrf.mxu0
        %v2629 = vadd.f32 %v2500, %v2628
        %2630 = vmatmul.bf16.gmra.mxu0 %v2216
        %v2631 = vpop.f32.mrf.mxu0
        %v2632 = vadd.f32 %v2503, %v2631
        %v2633 = vpop.f32.mrf.mxu0
        %v2634 = vadd.f32 %v2505, %v2633
        %2635 = vmatmul.bf16.gmra.mxu0 %v2219
        %v2636 = vpop.f32.mrf.mxu0
        %v2637 = vadd.f32 %v2508, %v2636
        %v2638 = vpop.f32.mrf.mxu0
        %v2639 = vadd.f32 %v2510, %v2638
        %2640 = vmatmul.bf16.gmra.mxu0 %v2222
        %v2641 = vpop.f32.mrf.mxu0
        %v2642 = vadd.f32 %v2513, %v2641
        %v2643 = vpop.f32.mrf.mxu0
        %v2644 = vadd.f32 %v2515, %v2643
        %2645 = vmatmul.bf16.gmra.mxu0 %v2225
        %v2646 = vpop.f32.mrf.mxu0
        %v2647 = vadd.f32 %v2518, %v2646
        %v2648 = vpop.f32.mrf.mxu0
        %v2649 = vadd.f32 %v2520, %v2648
        %2650 = vmatmul.bf16.gmra.mxu0 %v2228
        %v2651 = vpop.f32.mrf.mxu0
        %v2652 = vadd.f32 %v2523, %v2651
        %v2653 = vpop.f32.mrf.mxu0
        %v2654 = vadd.f32 %v2525, %v2653
        %2655 = vmatmul.bf16.gmra.mxu0 %v2231
        %v2656 = vpop.f32.mrf.mxu0
        %v2657 = vadd.f32 %v2528, %v2656
        %v2658 = vpop.f32.mrf.mxu0
        %v2659 = vadd.f32 %v2530, %v2658
        %2660 = vmatmul.bf16.gmra.mxu0 %v2234
        %v2661 = vpop.f32.mrf.mxu0
        %v2662 = vadd.f32 %v2533, %v2661
        %v2663 = vpop.f32.mrf.mxu0
        %v2664 = vadd.f32 %v2535, %v2663
        %2665 = vmatmul.bf16.gmra.mxu0 %v2237
        %v2666 = vpop.f32.mrf.mxu0
        %v2667 = vadd.f32 %v2538, %v2666
        %v2668 = vpop.f32.mrf.mxu0
        %v2669 = vadd.f32 %v2540, %v2668
        %2670 = vmatmul.bf16.gmra.mxu0 %v2240
        %v2671 = vpop.f32.mrf.mxu0
        %v2672 = vadd.f32 %v2543, %v2671
        %v2673 = vpop.f32.mrf.mxu0
        %v2674 = vadd.f32 %v2545, %v2673
        %2675 = vmatmul.bf16.gmra.mxu0 %v2243
        %v2676 = vpop.f32.mrf.mxu0
        %v2677 = vadd.f32 %v2548, %v2676
        %v2678 = vpop.f32.mrf.mxu0
        %v2679 = vadd.f32 %v2550, %v2678
        %2680 = vmatmul.bf16.gmra.mxu0 %v2246
        %v2681 = vpop.f32.mrf.mxu0
        %v2682 = vadd.f32 %v2553, %v2681
        %v2683 = vpop.f32.mrf.mxu0
        %v2684 = vadd.f32 %v2555, %v2683
        %2685 = vmatmul.bf16.gmra.mxu0 %v2249
        %v2686 = vpop.f32.mrf.mxu0
        %v2687 = vadd.f32 %v2558, %v2686
        %v2688 = vpop.f32.mrf.mxu0
        %v2689 = vadd.f32 %v2560, %v2688
        %2690 = vmatmul.bf16.gmra.mxu0 %v2252
        %v2691 = vpop.f32.mrf.mxu0
        %v2692 = vadd.f32 %v2563, %v2691
        %v2693 = vpop.f32.mrf.mxu0
        %v2694 = vadd.f32 %v2565, %v2693
        %2695 = vmatmul.bf16.gmra.mxu0 %v2255
        %v2696 = vpop.f32.mrf.mxu0
        %v2697 = vadd.f32 %v2568, %v2696
        %v2698 = vpop.f32.mrf.mxu0
        %v2699 = vadd.f32 %v2570, %v2698
        %2700 = vmatmul.bf16.gmra.mxu0 %v2258
        %v2701 = vpop.f32.mrf.mxu0
        %v2702 = vadd.f32 %v2573, %v2701
        %v2703 = vpop.f32.mrf.mxu0
        %v2704 = vadd.f32 %v2575, %v2703
        %2705 = vmatmul.bf16.gmra.mxu0 %v2261
        %v2706 = vpop.f32.mrf.mxu0
        %v2707 = vadd.f32 %v2578, %v2706
        %v2708 = vpop.f32.mrf.mxu0
        %v2709 = vadd.f32 %v2580, %v2708
        %2710 = vmatmul.bf16.gmra.mxu0 %v2264
        %v2711 = vpop.f32.mrf.mxu0
        %v2712 = vadd.f32 %v2583, %v2711
        %v2713 = vpop.f32.mrf.mxu0
        %v2714 = vadd.f32 %v2585, %v2713
        %2715 = vmatmul.bf16.gmra.mxu0 %v2267
        %v2716 = vpop.f32.mrf.mxu0
        %v2717 = vadd.f32 %v2588, %v2716
        %v2718 = vpop.f32.mrf.mxu0
        %v2719 = vadd.f32 %v2590, %v2718
        %2720 = vmatmul.bf16.gmra.mxu0 %v2270
        %v2721 = vpop.f32.mrf.mxu0
        %v2722 = vadd.f32 %v2593, %v2721
        %v2723 = vpop.f32.mrf.mxu0
        %v2724 = vadd.f32 %v2595, %v2723
        %2725 = vmatmul.bf16.gmra.mxu0 %v2273
        %v2726 = vpop.f32.mrf.mxu0
        %v2727 = vadd.f32 %v2598, %v2726
        %v2728 = vpop.f32.mrf.mxu0
        %v2729 = vadd.f32 %v2600, %v2728
        %2730 = vmatmul.bf16.gmra.mxu0 %v2276
        %v2731 = vpop.f32.mrf.mxu0
        %v2732 = vadd.f32 %v2603, %v2731
        %v2733 = vpop.f32.mrf.mxu0
        %v2734 = vadd.f32 %v2605, %v2733
        %2735 = vdwg.mxu0
        %v2736 = vpack.c.bf16 %v2619, %v2617
        %v2737 = vpack.c.bf16 %v2624, %v2622
        %v2738 = vpack.c.bf16 %v2629, %v2627
        %v2739 = vpack.c.bf16 %v2634, %v2632
        %v2740 = vpack.c.bf16 %v2639, %v2637
        %v2741 = vpack.c.bf16 %v2644, %v2642
        %v2742 = vpack.c.bf16 %v2649, %v2647
        %v2743 = vpack.c.bf16 %v2654, %v2652
        %v2744 = vpack.c.bf16 %v2659, %v2657
        %v2745 = vpack.c.bf16 %v2664, %v2662
        %v2746 = vpack.c.bf16 %v2669, %v2667
        %v2747 = vpack.c.bf16 %v2674, %v2672
        %v2748 = vpack.c.bf16 %v2679, %v2677
        %v2749 = vpack.c.bf16 %v2684, %v2682
        %v2750 = vpack.c.bf16 %v2689, %v2687
        %v2751 = vpack.c.bf16 %v2694, %v2692
        %v2752 = vpack.c.bf16 %v2699, %v2697
        %v2753 = vpack.c.bf16 %v2704, %v2702
        %v2754 = vpack.c.bf16 %v2709, %v2707
        %v2755 = vpack.c.bf16 %v2714, %v2712
        %v2756 = vpack.c.bf16 %v2719, %v2717
        %v2757 = vpack.c.bf16 %v2724, %v2722
        %v2758 = vpack.c.bf16 %v2729, %v2727
        %v2759 = vpack.c.bf16 %v2734, %v2732
        %v2760 = vld [vmem:[%s5] sm:$0xf]
        %v2761 = vld [vmem:[%s5 + $0x4] sm:$0xf]
        %v2762 = vld [vmem:[%s5 + $0x8] sm:$0xf]
        %v2763 = vld [vmem:[%s5 + $0xc] sm:$0xf]
        %v2764 = vld [vmem:[%s5 + $0x10] sm:$0xf]
        %v2765 = vld [vmem:[%s5 + $0x14] sm:$0xf]
        %v2766 = vld [vmem:[%s5 + $0x18] sm:$0xf]
        %v2767 = vld [vmem:[%s5 + $0x1c] sm:$0xf]
        %v2768 = vld [vmem:[%s5 + $0x20] sm:$0xf]
        %v2769 = vld [vmem:[%s5 + $0x24] sm:$0xf]
        %v2770 = vld [vmem:[%s5 + $0x28] sm:$0xf]
        %v2771 = vld [vmem:[%s5 + $0x2c] sm:$0xf]
        %v2772 = vld [vmem:[%s5 + $0x30] sm:$0xf]
        %v2773 = vld [vmem:[%s5 + $0x34] sm:$0xf]
        %v2774 = vld [vmem:[%s5 + $0x38] sm:$0xf]
        %v2775 = vld [vmem:[%s5 + $0x3c] sm:$0xf]
        %v2792 = vunpack.c.l.b16 %v2760
        %v2793 = vunpack.c.l.b16 %v2761
        %v2794 = vunpack.c.l.b16 %v2762
        %v2795 = vunpack.c.l.b16 %v2763
        %v2796 = vunpack.c.l.b16 %v2764
        %v2797 = vunpack.c.l.b16 %v2765
        %v2798 = vunpack.c.l.b16 %v2766
        %v2799 = vunpack.c.l.b16 %v2767
        %v2800 = vunpack.c.l.b16 %v2768
        %v2801 = vunpack.c.l.b16 %v2769
        %v2802 = vunpack.c.l.b16 %v2770
        %v2803 = vunpack.c.l.b16 %v2771
        %v2804 = vunpack.c.l.b16 %v2772
        %v2805 = vunpack.c.l.b16 %v2773
        %v2806 = vunpack.c.l.b16 %v2774
        %v2807 = vunpack.c.l.b16 %v2775
        %v2808 = vpack.c.b16 %v2793, %v2792
        %v2809 = vpack.c.b16 %v2795, %v2794
        %v2810 = vpack.c.b16 %v2797, %v2796
        %v2811 = vpack.c.b16 %v2799, %v2798
        %v2812 = vpack.c.b16 %v2801, %v2800
        %v2813 = vpack.c.b16 %v2803, %v2802
        %v2814 = vpack.c.b16 %v2805, %v2804
        %v2815 = vpack.c.b16 %v2807, %v2806
        %2824 = vmatpush.bf16.msra.mxu0 %v2815
        %2825 = vmatpush.bf16.msra.mxu0 %v2814
        %2826 = vmatpush.bf16.msra.mxu0 %v2813
        %2827 = vmatpush.bf16.msra.mxu0 %v2812
        %2828 = vmatpush.bf16.msra.mxu0 %v2811
        %2829 = vmatpush.bf16.msra.mxu0 %v2810
        %2830 = vmatpush.bf16.msra.mxu0 %v2809
        %2831 = vmatpush.bf16.msra.mxu0 %v2808
        %2832 = vmatmul.bf16.gmra.mxu0 %v2736
        %v2833 = vpop.f32.mrf.mxu0
        %v2834 = vadd.f32 0.0, %v2833
        %v2835 = vpop.f32.mrf.mxu0
        %v2836 = vadd.f32 0.0, %v2835
        %2837 = vmatmul.bf16.gmra.mxu0 %v2737
        %v2838 = vpop.f32.mrf.mxu0
        %v2839 = vadd.f32 0.0, %v2838
        %v2840 = vpop.f32.mrf.mxu0
        %v2841 = vadd.f32 0.0, %v2840
        %2842 = vmatmul.bf16.gmra.mxu0 %v2738
        %v2843 = vpop.f32.mrf.mxu0
        %v2844 = vadd.f32 0.0, %v2843
        %v2845 = vpop.f32.mrf.mxu0
        %v2846 = vadd.f32 0.0, %v2845
        %2847 = vmatmul.bf16.gmra.mxu0 %v2739
        %v2848 = vpop.f32.mrf.mxu0
        %v2849 = vadd.f32 0.0, %v2848
        %v2850 = vpop.f32.mrf.mxu0
        %v2851 = vadd.f32 0.0, %v2850
        %2852 = vmatmul.bf16.gmra.mxu0 %v2740
        %v2853 = vpop.f32.mrf.mxu0
        %v2854 = vadd.f32 0.0, %v2853
        %v2855 = vpop.f32.mrf.mxu0
        %v2856 = vadd.f32 0.0, %v2855
        %2857 = vmatmul.bf16.gmra.mxu0 %v2741
        %v2858 = vpop.f32.mrf.mxu0
        %v2859 = vadd.f32 0.0, %v2858
        %v2860 = vpop.f32.mrf.mxu0
        %v2861 = vadd.f32 0.0, %v2860
        %2862 = vmatmul.bf16.gmra.mxu0 %v2742
        %v2863 = vpop.f32.mrf.mxu0
        %v2864 = vadd.f32 0.0, %v2863
        %v2865 = vpop.f32.mrf.mxu0
        %v2866 = vadd.f32 0.0, %v2865
        %2867 = vmatmul.bf16.gmra.mxu0 %v2743
        %v2868 = vpop.f32.mrf.mxu0
        %v2869 = vadd.f32 0.0, %v2868
        %v2870 = vpop.f32.mrf.mxu0
        %v2871 = vadd.f32 0.0, %v2870
        %2872 = vmatmul.bf16.gmra.mxu0 %v2744
        %v2873 = vpop.f32.mrf.mxu0
        %v2874 = vadd.f32 0.0, %v2873
        %v2875 = vpop.f32.mrf.mxu0
        %v2876 = vadd.f32 0.0, %v2875
        %2877 = vmatmul.bf16.gmra.mxu0 %v2745
        %v2878 = vpop.f32.mrf.mxu0
        %v2879 = vadd.f32 0.0, %v2878
        %v2880 = vpop.f32.mrf.mxu0
        %v2881 = vadd.f32 0.0, %v2880
        %2882 = vmatmul.bf16.gmra.mxu0 %v2746
        %v2883 = vpop.f32.mrf.mxu0
        %v2884 = vadd.f32 0.0, %v2883
        %v2885 = vpop.f32.mrf.mxu0
        %v2886 = vadd.f32 0.0, %v2885
        %2887 = vmatmul.bf16.gmra.mxu0 %v2747
        %v2888 = vpop.f32.mrf.mxu0
        %v2889 = vadd.f32 0.0, %v2888
        %v2890 = vpop.f32.mrf.mxu0
        %v2891 = vadd.f32 0.0, %v2890
        %2892 = vmatmul.bf16.gmra.mxu0 %v2748
        %v2893 = vpop.f32.mrf.mxu0
        %v2894 = vadd.f32 0.0, %v2893
        %v2895 = vpop.f32.mrf.mxu0
        %v2896 = vadd.f32 0.0, %v2895
        %2897 = vmatmul.bf16.gmra.mxu0 %v2749
        %v2898 = vpop.f32.mrf.mxu0
        %v2899 = vadd.f32 0.0, %v2898
        %v2900 = vpop.f32.mrf.mxu0
        %v2901 = vadd.f32 0.0, %v2900
        %2902 = vmatmul.bf16.gmra.mxu0 %v2750
        %v2903 = vpop.f32.mrf.mxu0
        %v2904 = vadd.f32 0.0, %v2903
        %v2905 = vpop.f32.mrf.mxu0
        %v2906 = vadd.f32 0.0, %v2905
        %2907 = vmatmul.bf16.gmra.mxu0 %v2751
        %v2908 = vpop.f32.mrf.mxu0
        %v2909 = vadd.f32 0.0, %v2908
        %v2910 = vpop.f32.mrf.mxu0
        %v2911 = vadd.f32 0.0, %v2910
        %2912 = vmatmul.bf16.gmra.mxu0 %v2752
        %v2913 = vpop.f32.mrf.mxu0
        %v2914 = vadd.f32 0.0, %v2913
        %v2915 = vpop.f32.mrf.mxu0
        %v2916 = vadd.f32 0.0, %v2915
        %2917 = vmatmul.bf16.gmra.mxu0 %v2753
        %v2918 = vpop.f32.mrf.mxu0
        %v2919 = vadd.f32 0.0, %v2918
        %v2920 = vpop.f32.mrf.mxu0
        %v2921 = vadd.f32 0.0, %v2920
        %2922 = vmatmul.bf16.gmra.mxu0 %v2754
        %v2923 = vpop.f32.mrf.mxu0
        %v2924 = vadd.f32 0.0, %v2923
        %v2925 = vpop.f32.mrf.mxu0
        %v2926 = vadd.f32 0.0, %v2925
        %2927 = vmatmul.bf16.gmra.mxu0 %v2755
        %v2928 = vpop.f32.mrf.mxu0
        %v2929 = vadd.f32 0.0, %v2928
        %v2930 = vpop.f32.mrf.mxu0
        %v2931 = vadd.f32 0.0, %v2930
        %2932 = vmatmul.bf16.gmra.mxu0 %v2756
        %v2933 = vpop.f32.mrf.mxu0
        %v2934 = vadd.f32 0.0, %v2933
        %v2935 = vpop.f32.mrf.mxu0
        %v2936 = vadd.f32 0.0, %v2935
        %2937 = vmatmul.bf16.gmra.mxu0 %v2757
        %v2938 = vpop.f32.mrf.mxu0
        %v2939 = vadd.f32 0.0, %v2938
        %v2940 = vpop.f32.mrf.mxu0
        %v2941 = vadd.f32 0.0, %v2940
        %2942 = vmatmul.bf16.gmra.mxu0 %v2758
        %v2943 = vpop.f32.mrf.mxu0
        %v2944 = vadd.f32 0.0, %v2943
        %v2945 = vpop.f32.mrf.mxu0
        %v2946 = vadd.f32 0.0, %v2945
        %2947 = vmatmul.bf16.gmra.mxu0 %v2759
        %v2948 = vpop.f32.mrf.mxu0
        %v2949 = vadd.f32 0.0, %v2948
        %v2950 = vpop.f32.mrf.mxu0
        %v2951 = vadd.f32 0.0, %v2950
        %2952 = vdwg.mxu0
        %v2953 = vmul.f32 %v2914, 1.13983
        %v2954 = vmul.f32 %v2916, 1.13983
        %v2955 = vmul.f32 %v2919, 1.13983
        %v2956 = vmul.f32 %v2921, 1.13983
        %v2957 = vmul.f32 %v2924, 1.13983
        %v2958 = vmul.f32 %v2926, 1.13983
        %v2959 = vmul.f32 %v2929, 1.13983
        %v2960 = vmul.f32 %v2931, 1.13983
        %v2961 = vmul.f32 %v2934, 1.13983
        %v2962 = vmul.f32 %v2936, 1.13983
        %v2963 = vmul.f32 %v2939, 1.13983
        %v2964 = vmul.f32 %v2941, 1.13983
        %v2965 = vmul.f32 %v2944, 1.13983
        %v2966 = vmul.f32 %v2946, 1.13983
        %v2967 = vmul.f32 %v2949, 1.13983
        %v2968 = vmul.f32 %v2951, 1.13983
        %v2969 = vadd.f32 %v2834, %v2953
        %v2970 = vadd.f32 %v2836, %v2954
        %v2971 = vadd.f32 %v2839, %v2955
        %v2972 = vadd.f32 %v2841, %v2956
        %v2973 = vadd.f32 %v2844, %v2957
        %v2974 = vadd.f32 %v2846, %v2958
        %v2975 = vadd.f32 %v2849, %v2959
        %v2976 = vadd.f32 %v2851, %v2960
        %v2977 = vadd.f32 %v2854, %v2961
        %v2978 = vadd.f32 %v2856, %v2962
        %v2979 = vadd.f32 %v2859, %v2963
        %v2980 = vadd.f32 %v2861, %v2964
        %v2981 = vadd.f32 %v2864, %v2965
        %v2982 = vadd.f32 %v2866, %v2966
        %v2983 = vadd.f32 %v2869, %v2967
        %v2984 = vadd.f32 %v2871, %v2968
        %2985 = vst [vmem:[%s349] sm:$0xff] %v2969
        %2986 = vst [vmem:[%s349 + $0x8] sm:$0xff] %v2970
        %2987 = vst [vmem:[%s349 + $0x10] sm:$0xff] %v2971
        %2988 = vst [vmem:[%s349 + $0x18] sm:$0xff] %v2972
        %2989 = vst [vmem:[%s349 + $0x20] sm:$0xff] %v2973
        %2990 = vst [vmem:[%s349 + $0x28] sm:$0xff] %v2974
        %2991 = vst [vmem:[%s349 + $0x30] sm:$0xff] %v2975
        %2992 = vst [vmem:[%s349 + $0x38] sm:$0xff] %v2976
        %2993 = vst [vmem:[%s349 + $0x40] sm:$0xff] %v2977
        %2994 = vst [vmem:[%s349 + $0x48] sm:$0xff] %v2978
        %2995 = vst [vmem:[%s349 + $0x50] sm:$0xff] %v2979
        %2996 = vst [vmem:[%s349 + $0x58] sm:$0xff] %v2980
        %2997 = vst [vmem:[%s349 + $0x60] sm:$0xff] %v2981
        %2998 = vst [vmem:[%s349 + $0x68] sm:$0xff] %v2982
        %2999 = vst [vmem:[%s349 + $0x70] sm:$0xff] %v2983
        %3000 = vst [vmem:[%s349 + $0x78] sm:$0xff] %v2984
        %v3001 = vmul.f32 %v2874, -0.39465
        %v3002 = vmul.f32 %v2876, -0.39465
        %v3003 = vmul.f32 %v2879, -0.39465
        %v3004 = vmul.f32 %v2881, -0.39465
        %v3005 = vmul.f32 %v2884, -0.39465
        %v3006 = vmul.f32 %v2886, -0.39465
        %v3007 = vmul.f32 %v2889, -0.39465
        %v3008 = vmul.f32 %v2891, -0.39465
        %v3009 = vmul.f32 %v2894, -0.39465
        %v3010 = vmul.f32 %v2896, -0.39465
        %v3011 = vmul.f32 %v2899, -0.39465
        %v3012 = vmul.f32 %v2901, -0.39465
        %v3013 = vmul.f32 %v2904, -0.39465
        %v3014 = vmul.f32 %v2906, -0.39465
        %v3015 = vmul.f32 %v2909, -0.39465
        %v3016 = vmul.f32 %v2911, -0.39465
        %v3017 = vadd.f32 %v2834, %v3001
        %v3018 = vadd.f32 %v2836, %v3002
        %v3019 = vadd.f32 %v2839, %v3003
        %v3020 = vadd.f32 %v2841, %v3004
        %v3021 = vadd.f32 %v2844, %v3005
        %v3022 = vadd.f32 %v2846, %v3006
        %v3023 = vadd.f32 %v2849, %v3007
        %v3024 = vadd.f32 %v2851, %v3008
        %v3025 = vadd.f32 %v2854, %v3009
        %v3026 = vadd.f32 %v2856, %v3010
        %v3027 = vadd.f32 %v2859, %v3011
        %v3028 = vadd.f32 %v2861, %v3012
        %v3029 = vadd.f32 %v2864, %v3013
        %v3030 = vadd.f32 %v2866, %v3014
        %v3031 = vadd.f32 %v2869, %v3015
        %v3032 = vadd.f32 %v2871, %v3016
        %v3033 = vmul.f32 %v2914, -0.5806
        %v3034 = vmul.f32 %v2916, -0.5806
        %v3035 = vmul.f32 %v2919, -0.5806
        %v3036 = vmul.f32 %v2921, -0.5806
        %v3037 = vmul.f32 %v2924, -0.5806
        %v3038 = vmul.f32 %v2926, -0.5806
        %v3039 = vmul.f32 %v2929, -0.5806
        %v3040 = vmul.f32 %v2931, -0.5806
        %v3041 = vmul.f32 %v2934, -0.5806
        %v3042 = vmul.f32 %v2936, -0.5806
        %v3043 = vmul.f32 %v2939, -0.5806
        %v3044 = vmul.f32 %v2941, -0.5806
        %v3045 = vmul.f32 %v2944, -0.5806
        %v3046 = vmul.f32 %v2946, -0.5806
        %v3047 = vmul.f32 %v2949, -0.5806
        %v3048 = vmul.f32 %v2951, -0.5806
        %v3049 = vadd.f32 %v3017, %v3033
        %v3050 = vadd.f32 %v3018, %v3034
        %v3051 = vadd.f32 %v3019, %v3035
        %v3052 = vadd.f32 %v3020, %v3036
        %v3053 = vadd.f32 %v3021, %v3037
        %v3054 = vadd.f32 %v3022, %v3038
        %v3055 = vadd.f32 %v3023, %v3039
        %v3056 = vadd.f32 %v3024, %v3040
        %v3057 = vadd.f32 %v3025, %v3041
        %v3058 = vadd.f32 %v3026, %v3042
        %v3059 = vadd.f32 %v3027, %v3043
        %v3060 = vadd.f32 %v3028, %v3044
        %v3061 = vadd.f32 %v3029, %v3045
        %v3062 = vadd.f32 %v3030, %v3046
        %v3063 = vadd.f32 %v3031, %v3047
        %v3064 = vadd.f32 %v3032, %v3048
        %s3065 = scalar_lea.vmem %s349, 128
        %3066 = vst [vmem:[%s3065] sm:$0xff] %v3049
        %3067 = vst [vmem:[%s3065 + $0x8] sm:$0xff] %v3050
        %3068 = vst [vmem:[%s3065 + $0x10] sm:$0xff] %v3051
        %3069 = vst [vmem:[%s3065 + $0x18] sm:$0xff] %v3052
        %3070 = vst [vmem:[%s3065 + $0x20] sm:$0xff] %v3053
        %3071 = vst [vmem:[%s3065 + $0x28] sm:$0xff] %v3054
        %3072 = vst [vmem:[%s3065 + $0x30] sm:$0xff] %v3055
        %3073 = vst [vmem:[%s3065 + $0x38] sm:$0xff] %v3056
        %3074 = vst [vmem:[%s3065 + $0x40] sm:$0xff] %v3057
        %3075 = vst [vmem:[%s3065 + $0x48] sm:$0xff] %v3058
        %3076 = vst [vmem:[%s3065 + $0x50] sm:$0xff] %v3059
        %3077 = vst [vmem:[%s3065 + $0x58] sm:$0xff] %v3060
        %3078 = vst [vmem:[%s3065 + $0x60] sm:$0xff] %v3061
        %3079 = vst [vmem:[%s3065 + $0x68] sm:$0xff] %v3062
        %3080 = vst [vmem:[%s3065 + $0x70] sm:$0xff] %v3063
        %3081 = vst [vmem:[%s3065 + $0x78] sm:$0xff] %v3064
        %v3082 = vmul.f32 %v2874, 2.03211
        %v3083 = vmul.f32 %v2876, 2.03211
        %v3084 = vmul.f32 %v2879, 2.03211
        %v3085 = vmul.f32 %v2881, 2.03211
        %v3086 = vmul.f32 %v2884, 2.03211
        %v3087 = vmul.f32 %v2886, 2.03211
        %v3088 = vmul.f32 %v2889, 2.03211
        %v3089 = vmul.f32 %v2891, 2.03211
        %v3090 = vmul.f32 %v2894, 2.03211
        %v3091 = vmul.f32 %v2896, 2.03211
        %v3092 = vmul.f32 %v2899, 2.03211
        %v3093 = vmul.f32 %v2901, 2.03211
        %v3094 = vmul.f32 %v2904, 2.03211
        %v3095 = vmul.f32 %v2906, 2.03211
        %v3096 = vmul.f32 %v2909, 2.03211
        %v3097 = vmul.f32 %v2911, 2.03211
        %v3098 = vadd.f32 %v2834, %v3082
        %v3099 = vadd.f32 %v2836, %v3083
        %v3100 = vadd.f32 %v2839, %v3084
        %v3101 = vadd.f32 %v2841, %v3085
        %v3102 = vadd.f32 %v2844, %v3086
        %v3103 = vadd.f32 %v2846, %v3087
        %v3104 = vadd.f32 %v2849, %v3088
        %v3105 = vadd.f32 %v2851, %v3089
        %v3106 = vadd.f32 %v2854, %v3090
        %v3107 = vadd.f32 %v2856, %v3091
        %v3108 = vadd.f32 %v2859, %v3092
        %v3109 = vadd.f32 %v2861, %v3093
        %v3110 = vadd.f32 %v2864, %v3094
        %v3111 = vadd.f32 %v2866, %v3095
        %v3112 = vadd.f32 %v2869, %v3096
        %v3113 = vadd.f32 %v2871, %v3097
        %s3114 = scalar_lea.vmem %s349, 256
        %3115 = vst [vmem:[%s3114] sm:$0xff] %v3098
        %3116 = vst [vmem:[%s3114 + $0x8] sm:$0xff] %v3099
        %3117 = vst [vmem:[%s3114 + $0x10] sm:$0xff] %v3100
        %3118 = vst [vmem:[%s3114 + $0x18] sm:$0xff] %v3101
        %3119 = vst [vmem:[%s3114 + $0x20] sm:$0xff] %v3102
        %3120 = vst [vmem:[%s3114 + $0x28] sm:$0xff] %v3103
        %3121 = vst [vmem:[%s3114 + $0x30] sm:$0xff] %v3104
        %3122 = vst [vmem:[%s3114 + $0x38] sm:$0xff] %v3105
        %3123 = vst [vmem:[%s3114 + $0x40] sm:$0xff] %v3106
        %3124 = vst [vmem:[%s3114 + $0x48] sm:$0xff] %v3107
        %3125 = vst [vmem:[%s3114 + $0x50] sm:$0xff] %v3108
        %3126 = vst [vmem:[%s3114 + $0x58] sm:$0xff] %v3109
        %3127 = vst [vmem:[%s3114 + $0x60] sm:$0xff] %v3110
        %3128 = vst [vmem:[%s3114 + $0x68] sm:$0xff] %v3111
        %3129 = vst [vmem:[%s3114 + $0x70] sm:$0xff] %v3112
        %3130 = vst [vmem:[%s3114 + $0x78] sm:$0xff] %v3113
        %s3131 = smul.u32 16, %s25
        %p3132 = scmp.lt.s32.totalorder %s24, 1
        %s3133 = scalar_select %p3132, %s24, 1
        %p3134 = scmp.lt.s32.totalorder %s3131, 15
        %s3135 = scalar_select %p3134, %s3131, 15
        %p3136 = scmp.lt.s32.totalorder %s26, 0
        %s3137 = scalar_select %p3136, %s26, 0
        %s3138 = sadd.s32 %s3137, %s3135
        %s3139 = smul.addr %s3133, 48
        %s3140 = sadd.s32 %s3138, %s3139
        %s3141 = smul.addr %s3140, 8
        %s3142 = scalar_lea.vmem %s6, %s3141
        // Predicated region
        $region53: #{jpeg_compression.1} parent=43 // pred_check
          %p3143 = pneg %p195
        $region54: #{jpeg_compression.1} parent=43 // pred_check_branch
          %3145 = sbr.rel (%p3143) target = $region56
        $region55: #{jpeg_compression.1} parent=43 // pred_region
          %s3146 = smul.u32 16, %s25
        $region56: #{jpeg_compression.1} parent=43 // pred_fallthru
          _
      $region44: #{jpeg_compression.1} parent=5 // pred_fallthru
        _
      %p3147 = scmp.le.s32.totalorder 2, %s14
      // Predicated region
      $region57: #{jpeg_compression.1} parent=5 // pred_check
        %p3148 = pneg %p3147
      $region58: #{jpeg_compression.1} parent=5 // pred_check_branch
        %3150 = sbr.rel (%p3148) target = $region60
      $region59: #{jpeg_compression.1} parent=5 // pred_region
        %s3151 = ssub.s32 %s14, 2
        // Predicated region
        $region61: #{jpeg_compression.1} parent=59 // pred_check
          %p3152 = pneg %p201
        $region62: #{jpeg_compression.1} parent=59 // pred_check_branch
          %3154 = sbr.rel (%p3152) target = $region64
        $region63: #{jpeg_compression.1} parent=59 // pred_region
          %s3155 = smul.u32 16, %s28
          %p3156 = scmp.lt.s32.totalorder %s27, 1
          %s3157 = scalar_select %p3156, %s27, 1
          %p3158 = scmp.lt.s32.totalorder %s3155, 15
          %s3159 = scalar_select %p3158, %s3155, 15
          %p3160 = scmp.lt.s32.totalorder %s29, 0
          %s3161 = scalar_select %p3160, %s29, 0
          %s3162 = sadd.s32 %s3161, %s3159
          %s3163 = smul.addr %s3157, 48
          %s3164 = sadd.s32 %s3162, %s3163
          %s3165 = smul.addr %s3164, 8
          %s3166 = scalar_lea.vmem %s6, %s3165
        $region64: #{jpeg_compression.1} parent=59 // pred_fallthru
          _
      $region60: #{jpeg_compression.1} parent=5 // pred_fallthru
        _
    $region6: #{jpeg_compression.1} parent=1 // loop_footer
      %s18 = sadd.s32 1, %s14
    $region7: #{jpeg_compression.1} parent=1 // loop_footer_branch
      %13 = sbr.rel target = $region3
    $region8: #{jpeg_compression.1} parent=1 // loop_exit
      _
    %3167 = vsyncpa [#allocation3], 1
    %s3168 = scalar_lea.sflag [#allocation3], 1
    %3169 = vsyncpa %s3168, 1
    %3170 = vsyncpa [#allocation5], 1

</llo_original>
